<compile_context>
chip_gen: v6e
topology: v6e:2x2x1
jax: 0.10.0
libtpu: 0.0.40
codegen_flags: <defaults>
</compile_context>

<pallas_src>
import functools

import jax
import jax.numpy as jnp
from jax import lax
from jax.experimental import pallas as pl
from jax.experimental.pallas import tpu as pltpu

LANE = 128        # padded hidden width (one full lane tile)
SUBLANE = 8       # f32 sublane tile
TB_MAX = 2048     # cap on batch-tile rows (double-buffered footprint < 3 MB)
SPLIT_MIN = 128   # above this batch size, force >=2 grid steps (v7x dual-TC)


def _round_up(n, m):
    return ((n + m - 1) // m) * m


def dqn_kernel(x_ref, w_ref, b_ref, o_ref):
    """One batch tile of the 3-layer MLP (x @ W + b, ReLU on layers 1-2).

    x_ref : [TB, state_dim]   unpadded states
    w_ref : [3, 128, 128]     packed zero-padded weights, W[in, out] layout
    b_ref : [3, 1, 128]       packed zero-padded biases
    o_ref : [TB, action_dim]  Q-values (narrow output, no lane padding in HBM)
    """
    state_dim = x_ref.shape[1]
    action_dim = o_ref.shape[1]
    x = x_ref[...]

    # fc1 + relu (only the first `state_dim` rows of the W1 slab are real).
    h = jnp.dot(x, w_ref[0, :state_dim, :],
                precision=lax.Precision.HIGHEST,
                preferred_element_type=jnp.float32) + b_ref[0]
    h = jnp.maximum(h, 0.0)

    # fc2 + relu
    h = jnp.dot(h, w_ref[1],
                precision=lax.Precision.HIGHEST,
                preferred_element_type=jnp.float32) + b_ref[1]
    h = jnp.maximum(h, 0.0)

    # fc3 (no activation); store only the real action lanes (masked vst —
    # the store slot is nowhere near saturating, HBM bytes are what matter).
    q = jnp.dot(h, w_ref[2],
                precision=lax.Precision.HIGHEST,
                preferred_element_type=jnp.float32) + b_ref[2]
    o_ref[...] = q[:, :action_dim]


def pack_params(params, state_dim, action_dim, hidden=32, p=LANE):
    """Pack the 6 PyTorch-layout tensors into 2 zero-padded VMEM-friendly slabs."""
    w_slab = jnp.zeros((3, p, p), jnp.float32)
    b_slab = jnp.zeros((3, 1, p), jnp.float32)
    w_slab = w_slab.at[0, :state_dim, :hidden].set(params["w1"])
    w_slab = w_slab.at[1, :hidden, :hidden].set(params["w2"])
    w_slab = w_slab.at[2, :hidden, :action_dim].set(params["w3"])
    b_slab = b_slab.at[0, :, :hidden].set(params["b1"])
    b_slab = b_slab.at[1, :, :hidden].set(params["b2"])
    b_slab = b_slab.at[2, :, :action_dim].set(params["b3"])
    return w_slab, b_slab


@functools.partial(jax.jit, static_argnums=(3,))
def dqn_forward_packed(x, w_slab, b_slab, action_dim):
    """x: [B, state_dim] f32.  Returns Q-values [B, action_dim] f32."""
    B, state_dim = x.shape
    p = w_slab.shape[-1]

    # Batch tiling: large, balanced tiles; >=2 grid steps once B > SPLIT_MIN so
    # v7x can shard the "parallel" axis over both TensorCores.  For small B a
    # single tile with tb == B (block dim == full array dim, always legal)
    # means no padding / extra XLA ops on the latency-bound path.
    if B > SPLIT_MIN:
        n_tiles = max(2, pl.cdiv(B, TB_MAX))
        tb = _round_up(pl.cdiv(B, n_tiles), SUBLANE)
    else:
        tb = B
    grid = (pl.cdiv(B, tb),)

    flops = 2 * grid[0] * tb * (state_dim * p + p * p + p * p)
    bytes_accessed = 4 * (x.size + w_slab.size + b_slab.size + B * action_dim)

    return pl.pallas_call(
        dqn_kernel,
        out_shape=jax.ShapeDtypeStruct((B, action_dim), jnp.float32),
        grid_spec=pltpu.PrefetchScalarGridSpec(
            num_scalar_prefetch=0,
            grid=grid,
            in_specs=[
                pl.BlockSpec((tb, state_dim), lambda i: (i, 0)),   # states, streamed
                pl.BlockSpec((3, p, p), lambda i: (0, 0, 0)),      # weights: VMEM-resident
                pl.BlockSpec((3, 1, p), lambda i: (0, 0, 0)),      # biases:  VMEM-resident
            ],
            out_specs=pl.BlockSpec((tb, action_dim), lambda i: (i, 0)),  # narrow output
        ),
        compiler_params=pltpu.CompilerParams(
            dimension_semantics=("parallel",),
        ),
        cost_estimate=pl.CostEstimate(
            flops=flops, transcendentals=0, bytes_accessed=bytes_accessed),
    )(x, w_slab, b_slab)


def dqn_forward(x, params, hidden=32):
    """Convenience wrapper taking unpacked PyTorch-layout params."""
    state_dim = x.shape[1]
    action_dim = params["w3"].shape[1]
    w_slab, b_slab = pack_params(params, state_dim, action_dim, hidden)
    return dqn_forward_packed(x, w_slab, b_slab, action_dim)


def init_params(key, state_dim, action_dim, hidden=32):
    """PyTorch nn.Linear default init: U[-1/sqrt(fan_in), 1/sqrt(fan_in)]."""
    ks = jax.random.split(key, 6)

    def linear(kw, kb, fan_in, fan_out):
        bound = 1.0 / jnp.sqrt(jnp.float32(fan_in))
        w = jax.random.uniform(kw, (fan_in, fan_out), jnp.float32, -bound, bound)
        b = jax.random.uniform(kb, (1, fan_out), jnp.float32, -bound, bound)
        return w, b

    w1, b1 = linear(ks[0], ks[1], state_dim, hidden)
    w2, b2 = linear(ks[2], ks[3], hidden, hidden)
    w3, b3 = linear(ks[4], ks[5], hidden, action_dim)
    return {"w1": w1, "b1": b1, "w2": w2, "b2": b2, "w3": w3, "b3": b3}


def dqn_reference(x, p):
    hi = lax.Precision.HIGHEST
    h1 = jnp.maximum(jnp.dot(x, p["w1"], precision=hi) + p["b1"], 0.0)
    h2 = jnp.maximum(jnp.dot(h1, p["w2"], precision=hi) + p["b2"], 0.0)
    return jnp.dot(h2, p["w3"], precision=hi) + p["b3"]


if __name__ == "__main__":
    key = jax.random.PRNGKey(0)
    k_x, k_p, k_x2, k_x3 = jax.random.split(key, 4)

    # CartPole: state_dim=4, action_dim=2, hidden=32. Small batch of 8 states.
    state_dim, action_dim, hidden, batch = 4, 2, 32, 8
    x = jax.random.normal(k_x, (batch, state_dim), jnp.float32)
    params = init_params(k_p, state_dim, action_dim, hidden)

    # Pack params once (reused across all forward calls).
    w_slab, b_slab = pack_params(params, state_dim, action_dim, hidden)

    out = jax.block_until_ready(dqn_forward_packed(x, w_slab, b_slab, action_dim))
    ref = dqn_reference(x, params)
    assert out.shape == (batch, action_dim)
    assert jnp.allclose(out, ref, atol=1e-5, rtol=1e-5), "mismatch vs reference (small batch)"

    # Multi-tile path with a ragged last block (grid=(2,), tb=152 covers 304 rows).
    x_big = jax.random.normal(k_x2, (300, state_dim), jnp.float32)
    out_big = jax.block_until_ready(dqn_forward_packed(x_big, w_slab, b_slab, action_dim))
    ref_big = dqn_reference(x_big, params)
    assert out_big.shape == (300, action_dim)
    assert jnp.allclose(out_big, ref_big, atol=1e-4, rtol=1e-4), "mismatch vs reference (big batch)"

    # Single tile, batch not a multiple of 8 (action-selection-like path).
    x_small = jax.random.normal(k_x3, (5, state_dim), jnp.float32)
    out_small = jax.block_until_ready(dqn_forward_packed(x_small, w_slab, b_slab, action_dim))
    ref_small = dqn_reference(x_small, params)
    assert out_small.shape == (5, action_dim)
    assert jnp.allclose(out_small, ref_small, atol=1e-5, rtol=1e-5), "mismatch vs reference (odd batch)"

    print("KERNEL_OK")
</pallas_src>

<mosaic_0001>
module attributes {stable_mosaic.version = 11 : i64} {
  func.func @dqn_kernel(%arg0: i32, %arg1: memref<8x4xf32, #tpu.memory_space<vmem>>, %arg2: memref<3x128x128xf32, #tpu.memory_space<vmem>>, %arg3: memref<3x1x128xf32, #tpu.memory_space<vmem>>, %arg4: memref<8x2xf32, #tpu.memory_space<vmem>>) attributes {dimension_semantics = [#tpu.dimension_semantics<parallel>], iteration_bounds = array<i64: 1>, scalar_prefetch = 0 : i64, scratch_operands = 0 : i64, tpu.core_type = #tpu.core_type<tc>, window_params = [{transform_indices = @transform_0, window_bounds = array<i64: 8, 4>}, {pipeline_mode = #tpu.pipeline_mode<synchronous>, transform_indices = @transform_1, window_bounds = array<i64: 3, 128, 128>}, {pipeline_mode = #tpu.pipeline_mode<synchronous>, transform_indices = @transform_2, window_bounds = array<i64: 3, 1, 128>}, {transform_indices = @transform_3, window_bounds = array<i64: 8, 2>}]} {
    %c0 = arith.constant 0 : index
    %c0_0 = arith.constant 0 : index
    %0 = vector.load %arg1[%c0, %c0_0] : memref<8x4xf32, #tpu.memory_space<vmem>>, vector<8x4xf32>
    %c0_1 = arith.constant 0 : index
    %c0_2 = arith.constant 0 : index
    %c0_3 = arith.constant 0 : index
    %1 = vector.load %arg2[%c0_1, %c0_2, %c0_3] : memref<3x128x128xf32, #tpu.memory_space<vmem>>, vector<1x4x128xf32>
    %2 = vector.shape_cast %1 : vector<1x4x128xf32> to vector<4x128xf32>
    %cst = arith.constant dense<0.000000e+00> : vector<8x128xf32>
    %3 = tpu.matmul %0, %2, %cst {dimension_numbers = #tpu.dot_dimension_numbers<[1], [0], [0], [1], [0, 0, 1, 1], [], []>, precision = #tpu.contract_precision<fp32>} : vector<8x4xf32>, vector<4x128xf32>, vector<8x128xf32> -> vector<8x128xf32>
    %c0_4 = arith.constant 0 : index
    %c0_5 = arith.constant 0 : index
    %c0_6 = arith.constant 0 : index
    %4 = vector.load %arg3[%c0_4, %c0_5, %c0_6] : memref<3x1x128xf32, #tpu.memory_space<vmem>>, vector<1x1x128xf32>
    %5 = vector.shape_cast %4 : vector<1x1x128xf32> to vector<1x128xf32>
    %6 = vector.broadcast %5 : vector<1x128xf32> to vector<8x128xf32>
    %7 = arith.addf %3, %6 : vector<8x128xf32>
    %cst_7 = arith.constant 0.000000e+00 : f32
    %8 = vector.broadcast %cst_7 : f32 to vector<8x128xf32>
    %9 = arith.maximumf %7, %8 : vector<8x128xf32>
    %c1 = arith.constant 1 : index
    %c0_8 = arith.constant 0 : index
    %c0_9 = arith.constant 0 : index
    %10 = vector.load %arg2[%c1, %c0_8, %c0_9] : memref<3x128x128xf32, #tpu.memory_space<vmem>>, vector<1x128x128xf32>
    %11 = vector.shape_cast %10 : vector<1x128x128xf32> to vector<128x128xf32>
    %cst_10 = arith.constant dense<0.000000e+00> : vector<8x128xf32>
    %12 = tpu.matmul %9, %11, %cst_10 {dimension_numbers = #tpu.dot_dimension_numbers<[1], [0], [0], [1], [0, 0, 1, 1], [], []>, precision = #tpu.contract_precision<fp32>} : vector<8x128xf32>, vector<128x128xf32>, vector<8x128xf32> -> vector<8x128xf32>
    %c1_11 = arith.constant 1 : index
    %c0_12 = arith.constant 0 : index
    %c0_13 = arith.constant 0 : index
    %13 = vector.load %arg3[%c1_11, %c0_12, %c0_13] : memref<3x1x128xf32, #tpu.memory_space<vmem>>, vector<1x1x128xf32>
    %14 = vector.shape_cast %13 : vector<1x1x128xf32> to vector<1x128xf32>
    %15 = vector.broadcast %14 : vector<1x128xf32> to vector<8x128xf32>
    %16 = arith.addf %12, %15 : vector<8x128xf32>
    %cst_14 = arith.constant 0.000000e+00 : f32
    %17 = vector.broadcast %cst_14 : f32 to vector<8x128xf32>
    %18 = arith.maximumf %16, %17 : vector<8x128xf32>
    %c2 = arith.constant 2 : index
    %c0_15 = arith.constant 0 : index
    %c0_16 = arith.constant 0 : index
    %19 = vector.load %arg2[%c2, %c0_15, %c0_16] : memref<3x128x128xf32, #tpu.memory_space<vmem>>, vector<1x128x128xf32>
    %20 = vector.shape_cast %19 : vector<1x128x128xf32> to vector<128x128xf32>
    %cst_17 = arith.constant dense<0.000000e+00> : vector<8x128xf32>
    %21 = tpu.matmul %18, %20, %cst_17 {dimension_numbers = #tpu.dot_dimension_numbers<[1], [0], [0], [1], [0, 0, 1, 1], [], []>, precision = #tpu.contract_precision<fp32>} : vector<8x128xf32>, vector<128x128xf32>, vector<8x128xf32> -> vector<8x128xf32>
    %c2_18 = arith.constant 2 : index
    %c0_19 = arith.constant 0 : index
    %c0_20 = arith.constant 0 : index
    %22 = vector.load %arg3[%c2_18, %c0_19, %c0_20] : memref<3x1x128xf32, #tpu.memory_space<vmem>>, vector<1x1x128xf32>
    %23 = vector.shape_cast %22 : vector<1x1x128xf32> to vector<1x128xf32>
    %24 = vector.broadcast %23 : vector<1x128xf32> to vector<8x128xf32>
    %25 = arith.addf %21, %24 : vector<8x128xf32>
    %26 = vector.extract_strided_slice %25 {offsets = [0, 0], sizes = [8, 2], strides = [1, 1]} : vector<8x128xf32> to vector<8x2xf32>
    %c0_21 = arith.constant 0 : index
    %c0_22 = arith.constant 0 : index
    %27 = vector.load %arg4[%c0_21, %c0_22] : memref<8x2xf32, #tpu.memory_space<vmem>>, vector<8x2xf32>
    tpu.vector_store %arg4[%c0_21, %c0_22], %26 {strides = array<i32>} : memref<8x2xf32, #tpu.memory_space<vmem>>, vector<8x2xf32>,
    return
  }
  func.func @transform_0(%arg0: i32) -> (i32, i32) {
    %c0_i32 = arith.constant 0 : i32
    %c0_i32_0 = arith.constant 0 : i32
    return %arg0, %c0_i32 : i32, i32
  }
  func.func @transform_1(%arg0: i32) -> (i32, i32, i32) {
    %c0_i32 = arith.constant 0 : i32
    %c0_i32_0 = arith.constant 0 : i32
    %c0_i32_1 = arith.constant 0 : i32
    %c0_i32_2 = arith.constant 0 : i32
    return %c0_i32, %c0_i32_0, %c0_i32_1 : i32, i32, i32
  }
  func.func @transform_2(%arg0: i32) -> (i32, i32, i32) {
    %c0_i32 = arith.constant 0 : i32
    %c0_i32_0 = arith.constant 0 : i32
    %c0_i32_1 = arith.constant 0 : i32
    %c0_i32_2 = arith.constant 0 : i32
    return %c0_i32, %c0_i32_0, %c0_i32_1 : i32, i32, i32
  }
  func.func @transform_3(%arg0: i32) -> (i32, i32) {
    %c0_i32 = arith.constant 0 : i32
    %c0_i32_0 = arith.constant 0 : i32
    return %arg0, %c0_i32 : i32, i32
  }
}

</mosaic_0001>

<llo_original>
// kernel: dqn_forward_packed.1
$region0: #{dqn_forward_packed.1}
  #allocation0 [shape = 'u32[]', space=smem, size = 0x4, offset = 0x4, fixed_abs, tag = 'smem constant byte address 0x4 - core index']
  #allocation1 [shape = 'u32[144,128]{1,0:T(1,128)}', space=vmem, size = 0x12000, scoped, tag = 'internal scratch']
  %s0 = inlined_call_operand.vmem [shape: f32[8,4], index: 0, kind: input, shape index: {}]
  %s1 = inlined_call_operand.hbm [shape: f32[3,128,128], index: 1, kind: input, shape index: {}]
  %s2 = inlined_call_operand.vmem [shape: f32[3,1,128], index: 2, kind: input, shape index: {}]
  %s3 = inlined_call_operand.vmem [shape: f32[8,2], index: 3, kind: output, shape index: {}]
  %s4 = sld [smem:[#allocation0]]
  $region26: #{dqn_forward_packed.1} parent=0
    _
  %s6 = ssub.s32 1, %s4
  %s7 = scalar_select 0, %s6, %s4
  $region1: #{dqn_forward_packed.1} parent=0
    #allocation2 [shape = 'u8[196608]{0}', space=vmem, size = 0x30000, scoped, tag = 'input window, operand 1, single buffered']
    #allocation3 [shape = 's32[1]{0}', space=sflag, size = 0x4, scoped, tag = 'scoped memory for dqn_forward_packed.1']
    %8 = vsyncpa [#allocation3], 0
    // Predicated region
    $region2: #{dqn_forward_packed.1} parent=1 // pred_check
      _
    $region3: #{dqn_forward_packed.1} parent=1 // pred_check_branch
      %10 = sbr.rel (0) target = $region5
    $region4: #{dqn_forward_packed.1} parent=1 // pred_region
      _
    $region5: #{dqn_forward_packed.1} parent=1 // pred_fallthru
      _
    // Predicated region
    $region6: #{dqn_forward_packed.1} parent=1 // pred_check
      _
    $region7: #{dqn_forward_packed.1} parent=1 // pred_check_branch
      %12 = sbr.rel (0) target = $region9
    $region8: #{dqn_forward_packed.1} parent=1 // pred_region
      %s14 = ssub.s32 6144, 6144
      %15 = vsyncadd [#allocation3], %s14
      %s16 = sshll.u32 [#allocation2], 4
      %s17 = int_to_ptr.vmem [resolvable:$true] %s16
      %22 = dma.hbm_to_vmem [thread:$0]  %s1, 6144, %s17, [#allocation3], 128, 128, 8
    $region9: #{dqn_forward_packed.1} parent=1 // pred_fallthru
      _
    // Predicated region
    $region10: #{dqn_forward_packed.1} parent=1 // pred_check
      _
    $region11: #{dqn_forward_packed.1} parent=1 // pred_check_branch
      %24 = sbr.rel (0) target = $region13
    $region12: #{dqn_forward_packed.1} parent=1 // pred_region
      _
    $region13: #{dqn_forward_packed.1} parent=1 // pred_fallthru
      _
    // Predicated region
    $region14: #{dqn_forward_packed.1} parent=1 // pred_check
      _
    $region15: #{dqn_forward_packed.1} parent=1 // pred_check_branch
      %26 = sbr.rel (0) target = $region17
    $region16: #{dqn_forward_packed.1} parent=1 // pred_region
      %27 = dma.done [#allocation3], 6144
    $region17: #{dqn_forward_packed.1} parent=1 // pred_fallthru
      _
    %v28 = vld [vmem:[%s0] sm:$0xff]
    %v29 = vld [vmem:[#allocation2] sm:$0xf]
    %v30 = vld [vmem:[%s2] sm:$0x1]
    %v32 = vlaneseq
    %v33 = vshrl.u32 %v32, 7
    %v34 = vsub.s32 0, %v33
    %v35 = vrot.slane %v30, %v34
    %vm37 = vcmask 31744
    %v39 = vsel %vm37, %v28, 0
    %vm41 = vcmask 1043456
    %v43 = vsel %vm41, %v29, 0
    %45 = vmatprep.subr.mxu0 0.0
    %46 = vmatpush1.msra.mxu0 0.0
    %47 = vmatprep.subr.mxu0 0.0
    %48 = vmatpush1.msra.mxu0 0.0
    %49 = vmatprep.subr.mxu0 0.0
    %50 = vmatpush1.msra.mxu0 0.0
    %51 = vmatprep.subr.mxu0 0.0
    %52 = vmatpush1.msra.mxu0 0.0
    %53 = vmatprep.subr.mxu0 0.0
    %54 = vmatpush1.msra.mxu0 0.0
    %55 = vmatprep.subr.mxu0 0.0
    %56 = vmatpush1.msra.mxu0 0.0
    %57 = vmatprep.subr.mxu0 0.0
    %58 = vmatpush1.msra.mxu0 0.0
    %59 = vmatprep.subr.mxu0 0.0
    %60 = vmatpush1.msra.mxu0 0.0
    %61 = vmatprep.subr.mxu0 0.0
    %62 = vmatpush1.msra.mxu0 0.0
    %63 = vmatprep.subr.mxu0 0.0
    %64 = vmatpush1.msra.mxu0 0.0
    %65 = vmatprep.subr.mxu0 0.0
    %66 = vmatpush1.msra.mxu0 0.0
    %67 = vmatprep.subr.mxu0 0.0
    %68 = vmatpush1.msra.mxu0 0.0
    %69 = vmatprep.subr.mxu0 0.0
    %70 = vmatpush1.msra.mxu0 0.0
    %71 = vmatprep.subr.mxu0 0.0
    %72 = vmatpush1.msra.mxu0 0.0
    %73 = vmatprep.subr.mxu0 0.0
    %74 = vmatpush1.msra.mxu0 0.0
    %75 = vmatprep.subr.mxu0 0.0
    %v76 = vand.u32 %v43, 4294901760
    %77 = vmatpush1.msra.mxu0 %v76
    %78 = vmatprep.subr.mxu0 0.0
    %79 = vmatpush2.msra.mxu0 0.0
    %80 = vmatprep.subr.mxu0 0.0
    %81 = vmatpush2.msra.mxu0 0.0
    %82 = vmatprep.subr.mxu0 0.0
    %83 = vmatpush2.msra.mxu0 0.0
    %84 = vmatprep.subr.mxu0 0.0
    %85 = vmatpush2.msra.mxu0 0.0
    %86 = vmatprep.subr.mxu0 0.0
    %87 = vmatpush2.msra.mxu0 0.0
    %88 = vmatprep.subr.mxu0 0.0
    %89 = vmatpush2.msra.mxu0 0.0
    %90 = vmatprep.subr.mxu0 0.0
    %91 = vmatpush2.msra.mxu0 0.0
    %92 = vmatprep.subr.mxu0 0.0
    %93 = vmatpush2.msra.mxu0 0.0
    %94 = vmatprep.subr.mxu0 0.0
    %95 = vmatpush2.msra.mxu0 0.0
    %96 = vmatprep.subr.mxu0 0.0
    %97 = vmatpush2.msra.mxu0 0.0
    %98 = vmatprep.subr.mxu0 0.0
    %99 = vmatpush2.msra.mxu0 0.0
    %100 = vmatprep.subr.mxu0 0.0
    %101 = vmatpush2.msra.mxu0 0.0
    %102 = vmatprep.subr.mxu0 0.0
    %103 = vmatpush2.msra.mxu0 0.0
    %104 = vmatprep.subr.mxu0 0.0
    %105 = vmatpush2.msra.mxu0 0.0
    %106 = vmatprep.subr.mxu0 0.0
    %107 = vmatpush2.msra.mxu0 0.0
    %108 = vmatprep.subr.mxu0 0.0
    %109 = vmatpush2.msra.mxu0 0.0
    %110 = vmatprep.mubr.f32.mxu0 0.0
    %v111 = vand.u32 %v39, 4294901760
    %v112 = vsub.f32 %v39, %v111
    %v113 = vand.u32 %v112, 4294901760
    %v114 = vsub.f32 %v112, %v113
    %v115 = vand.u32 %v114, 4294901760
    %116 = vmatmul.mubr.f32.gmra.mxu0 %v115
    %v117 = vpop.f32.mrf.mxu0
    %v118 = vadd.f32 %v35, %v117
    %v119 = vpop.f32.mrf.mxu0
    %120 = vdwg.mxu0
    %121 = vmatprep.subr.mxu0 0.0
    %122 = vmatpush1.msra.mxu0 0.0
    %123 = vmatprep.subr.mxu0 0.0
    %124 = vmatpush1.msra.mxu0 0.0
    %125 = vmatprep.subr.mxu0 0.0
    %126 = vmatpush1.msra.mxu0 0.0
    %127 = vmatprep.subr.mxu0 0.0
    %128 = vmatpush1.msra.mxu0 0.0
    %129 = vmatprep.subr.mxu0 0.0
    %130 = vmatpush1.msra.mxu0 0.0
    %131 = vmatprep.subr.mxu0 0.0
    %132 = vmatpush1.msra.mxu0 0.0
    %133 = vmatprep.subr.mxu0 0.0
    %134 = vmatpush1.msra.mxu0 0.0
    %135 = vmatprep.subr.mxu0 0.0
    %136 = vmatpush1.msra.mxu0 0.0
    %137 = vmatprep.subr.mxu0 0.0
    %138 = vmatpush1.msra.mxu0 0.0
    %139 = vmatprep.subr.mxu0 0.0
    %140 = vmatpush1.msra.mxu0 0.0
    %141 = vmatprep.subr.mxu0 0.0
    %142 = vmatpush1.msra.mxu0 0.0
    %143 = vmatprep.subr.mxu0 0.0
    %144 = vmatpush1.msra.mxu0 0.0
    %145 = vmatprep.subr.mxu0 0.0
    %146 = vmatpush1.msra.mxu0 0.0
    %147 = vmatprep.subr.mxu0 0.0
    %148 = vmatpush1.msra.mxu0 0.0
    %149 = vmatprep.subr.mxu0 0.0
    %150 = vmatpush1.msra.mxu0 0.0
    %151 = vmatprep.subr.mxu0 0.0
    %v152 = vand.u32 %v43, 4294901760
    %v153 = vsub.f32 %v43, %v152
    %v154 = vand.u32 %v153, 4294901760
    %v155 = vsub.f32 %v153, %v154
    %v156 = vand.u32 %v155, 4294901760
    %157 = vmatpush1.msra.mxu0 %v156
    %158 = vmatprep.subr.mxu0 0.0
    %159 = vmatpush2.msra.mxu0 0.0
    %160 = vmatprep.subr.mxu0 0.0
    %161 = vmatpush2.msra.mxu0 0.0
    %162 = vmatprep.subr.mxu0 0.0
    %163 = vmatpush2.msra.mxu0 0.0
    %164 = vmatprep.subr.mxu0 0.0
    %165 = vmatpush2.msra.mxu0 0.0
    %166 = vmatprep.subr.mxu0 0.0
    %167 = vmatpush2.msra.mxu0 0.0
    %168 = vmatprep.subr.mxu0 0.0
    %169 = vmatpush2.msra.mxu0 0.0
    %170 = vmatprep.subr.mxu0 0.0
    %171 = vmatpush2.msra.mxu0 0.0
    %172 = vmatprep.subr.mxu0 0.0
    %173 = vmatpush2.msra.mxu0 0.0
    %174 = vmatprep.subr.mxu0 0.0
    %175 = vmatpush2.msra.mxu0 0.0
    %176 = vmatprep.subr.mxu0 0.0
    %177 = vmatpush2.msra.mxu0 0.0
    %178 = vmatprep.subr.mxu0 0.0
    %179 = vmatpush2.msra.mxu0 0.0
    %180 = vmatprep.subr.mxu0 0.0
    %181 = vmatpush2.msra.mxu0 0.0
    %182 = vmatprep.subr.mxu0 0.0
    %183 = vmatpush2.msra.mxu0 0.0
    %184 = vmatprep.subr.mxu0 0.0
    %185 = vmatpush2.msra.mxu0 0.0
    %186 = vmatprep.subr.mxu0 0.0
    %187 = vmatpush2.msra.mxu0 0.0
    %188 = vmatprep.subr.mxu0 0.0
    %189 = vmatpush2.msra.mxu0 0.0
    %190 = vmatprep.mubr.f32.mxu0 0.0
    %v191 = vand.u32 %v39, 4294901760
    %192 = vmatmul.mubr.f32.gmra.mxu0 %v191
    %v193 = vpop.f32.mrf.mxu0
    %v194 = vadd.f32 %v118, %v193
    %v195 = vpop.f32.mrf.mxu0
    %196 = vdwg.mxu0
    %197 = vmatprep.subr.mxu0 0.0
    %198 = vmatpush1.msra.mxu0 0.0
    %199 = vmatprep.subr.mxu0 0.0
    %200 = vmatpush1.msra.mxu0 0.0
    %201 = vmatprep.subr.mxu0 0.0
    %202 = vmatpush1.msra.mxu0 0.0
    %203 = vmatprep.subr.mxu0 0.0
    %204 = vmatpush1.msra.mxu0 0.0
    %205 = vmatprep.subr.mxu0 0.0
    %206 = vmatpush1.msra.mxu0 0.0
    %207 = vmatprep.subr.mxu0 0.0
    %208 = vmatpush1.msra.mxu0 0.0
    %209 = vmatprep.subr.mxu0 0.0
    %210 = vmatpush1.msra.mxu0 0.0
    %211 = vmatprep.subr.mxu0 0.0
    %212 = vmatpush1.msra.mxu0 0.0
    %213 = vmatprep.subr.mxu0 0.0
    %214 = vmatpush1.msra.mxu0 0.0
    %215 = vmatprep.subr.mxu0 0.0
    %216 = vmatpush1.msra.mxu0 0.0
    %217 = vmatprep.subr.mxu0 0.0
    %218 = vmatpush1.msra.mxu0 0.0
    %219 = vmatprep.subr.mxu0 0.0
    %220 = vmatpush1.msra.mxu0 0.0
    %221 = vmatprep.subr.mxu0 0.0
    %222 = vmatpush1.msra.mxu0 0.0
    %223 = vmatprep.subr.mxu0 0.0
    %224 = vmatpush1.msra.mxu0 0.0
    %225 = vmatprep.subr.mxu0 0.0
    %226 = vmatpush1.msra.mxu0 0.0
    %227 = vmatprep.subr.mxu0 0.0
    %v228 = vand.u32 %v43, 4294901760
    %v229 = vsub.f32 %v43, %v228
    %230 = vmatpush1.msra.mxu0 %v229
    %231 = vmatprep.subr.mxu0 0.0
    %232 = vmatpush2.msra.mxu0 0.0
    %233 = vmatprep.subr.mxu0 0.0
    %234 = vmatpush2.msra.mxu0 0.0
    %235 = vmatprep.subr.mxu0 0.0
    %236 = vmatpush2.msra.mxu0 0.0
    %237 = vmatprep.subr.mxu0 0.0
    %238 = vmatpush2.msra.mxu0 0.0
    %239 = vmatprep.subr.mxu0 0.0
    %240 = vmatpush2.msra.mxu0 0.0
    %241 = vmatprep.subr.mxu0 0.0
    %242 = vmatpush2.msra.mxu0 0.0
    %243 = vmatprep.subr.mxu0 0.0
    %244 = vmatpush2.msra.mxu0 0.0
    %245 = vmatprep.subr.mxu0 0.0
    %246 = vmatpush2.msra.mxu0 0.0
    %247 = vmatprep.subr.mxu0 0.0
    %248 = vmatpush2.msra.mxu0 0.0
    %249 = vmatprep.subr.mxu0 0.0
    %250 = vmatpush2.msra.mxu0 0.0
    %251 = vmatprep.subr.mxu0 0.0
    %252 = vmatpush2.msra.mxu0 0.0
    %253 = vmatprep.subr.mxu0 0.0
    %254 = vmatpush2.msra.mxu0 0.0
    %255 = vmatprep.subr.mxu0 0.0
    %256 = vmatpush2.msra.mxu0 0.0
    %257 = vmatprep.subr.mxu0 0.0
    %258 = vmatpush2.msra.mxu0 0.0
    %259 = vmatprep.subr.mxu0 0.0
    %260 = vmatpush2.msra.mxu0 0.0
    %261 = vmatprep.subr.mxu0 0.0
    %262 = vmatpush2.msra.mxu0 0.0
    %263 = vmatprep.mubr.f32.mxu0 0.0
    %v264 = vand.u32 %v39, 4294901760
    %v265 = vsub.f32 %v39, %v264
    %266 = vmatmul.mubr.f32.gmra.mxu0 %v265
    %v267 = vpop.f32.mrf.mxu0
    %v268 = vadd.f32 %v194, %v267
    %v269 = vpop.f32.mrf.mxu0
    %270 = vdwg.mxu0
    %271 = vmatprep.subr.mxu0 0.0
    %272 = vmatpush1.msra.mxu0 0.0
    %273 = vmatprep.subr.mxu0 0.0
    %274 = vmatpush1.msra.mxu0 0.0
    %275 = vmatprep.subr.mxu0 0.0
    %276 = vmatpush1.msra.mxu0 0.0
    %277 = vmatprep.subr.mxu0 0.0
    %278 = vmatpush1.msra.mxu0 0.0
    %279 = vmatprep.subr.mxu0 0.0
    %280 = vmatpush1.msra.mxu0 0.0
    %281 = vmatprep.subr.mxu0 0.0
    %282 = vmatpush1.msra.mxu0 0.0
    %283 = vmatprep.subr.mxu0 0.0
    %284 = vmatpush1.msra.mxu0 0.0
    %285 = vmatprep.subr.mxu0 0.0
    %286 = vmatpush1.msra.mxu0 0.0
    %287 = vmatprep.subr.mxu0 0.0
    %288 = vmatpush1.msra.mxu0 0.0
    %289 = vmatprep.subr.mxu0 0.0
    %290 = vmatpush1.msra.mxu0 0.0
    %291 = vmatprep.subr.mxu0 0.0
    %292 = vmatpush1.msra.mxu0 0.0
    %293 = vmatprep.subr.mxu0 0.0
    %294 = vmatpush1.msra.mxu0 0.0
    %295 = vmatprep.subr.mxu0 0.0
    %296 = vmatpush1.msra.mxu0 0.0
    %297 = vmatprep.subr.mxu0 0.0
    %298 = vmatpush1.msra.mxu0 0.0
    %299 = vmatprep.subr.mxu0 0.0
    %300 = vmatpush1.msra.mxu0 0.0
    %301 = vmatprep.subr.mxu0 0.0
    %v302 = vand.u32 %v43, 4294901760
    %303 = vmatpush1.msra.mxu0 %v302
    %304 = vmatprep.subr.mxu0 0.0
    %305 = vmatpush2.msra.mxu0 0.0
    %306 = vmatprep.subr.mxu0 0.0
    %307 = vmatpush2.msra.mxu0 0.0
    %308 = vmatprep.subr.mxu0 0.0
    %309 = vmatpush2.msra.mxu0 0.0
    %310 = vmatprep.subr.mxu0 0.0
    %311 = vmatpush2.msra.mxu0 0.0
    %312 = vmatprep.subr.mxu0 0.0
    %313 = vmatpush2.msra.mxu0 0.0
    %314 = vmatprep.subr.mxu0 0.0
    %315 = vmatpush2.msra.mxu0 0.0
    %316 = vmatprep.subr.mxu0 0.0
    %317 = vmatpush2.msra.mxu0 0.0
    %318 = vmatprep.subr.mxu0 0.0
    %319 = vmatpush2.msra.mxu0 0.0
    %320 = vmatprep.subr.mxu0 0.0
    %321 = vmatpush2.msra.mxu0 0.0
    %322 = vmatprep.subr.mxu0 0.0
    %323 = vmatpush2.msra.mxu0 0.0
    %324 = vmatprep.subr.mxu0 0.0
    %325 = vmatpush2.msra.mxu0 0.0
    %326 = vmatprep.subr.mxu0 0.0
    %327 = vmatpush2.msra.mxu0 0.0
    %328 = vmatprep.subr.mxu0 0.0
    %329 = vmatpush2.msra.mxu0 0.0
    %330 = vmatprep.subr.mxu0 0.0
    %331 = vmatpush2.msra.mxu0 0.0
    %332 = vmatprep.subr.mxu0 0.0
    %333 = vmatpush2.msra.mxu0 0.0
    %334 = vmatprep.subr.mxu0 0.0
    %335 = vmatpush2.msra.mxu0 0.0
    %336 = vmatprep.mubr.f32.mxu0 0.0
    %v337 = vand.u32 %v39, 4294901760
    %v338 = vsub.f32 %v39, %v337
    %v339 = vand.u32 %v338, 4294901760
    %340 = vmatmul.mubr.f32.gmra.mxu0 %v339
    %v341 = vpop.f32.mrf.mxu0
    %v342 = vadd.f32 %v268, %v341
    %v343 = vpop.f32.mrf.mxu0
    %344 = vdwg.mxu0
    %345 = vmatprep.subr.mxu0 0.0
    %346 = vmatpush1.msra.mxu0 0.0
    %347 = vmatprep.subr.mxu0 0.0
    %348 = vmatpush1.msra.mxu0 0.0
    %349 = vmatprep.subr.mxu0 0.0
    %350 = vmatpush1.msra.mxu0 0.0
    %351 = vmatprep.subr.mxu0 0.0
    %352 = vmatpush1.msra.mxu0 0.0
    %353 = vmatprep.subr.mxu0 0.0
    %354 = vmatpush1.msra.mxu0 0.0
    %355 = vmatprep.subr.mxu0 0.0
    %356 = vmatpush1.msra.mxu0 0.0
    %357 = vmatprep.subr.mxu0 0.0
    %358 = vmatpush1.msra.mxu0 0.0
    %359 = vmatprep.subr.mxu0 0.0
    %360 = vmatpush1.msra.mxu0 0.0
    %361 = vmatprep.subr.mxu0 0.0
    %362 = vmatpush1.msra.mxu0 0.0
    %363 = vmatprep.subr.mxu0 0.0
    %364 = vmatpush1.msra.mxu0 0.0
    %365 = vmatprep.subr.mxu0 0.0
    %366 = vmatpush1.msra.mxu0 0.0
    %367 = vmatprep.subr.mxu0 0.0
    %368 = vmatpush1.msra.mxu0 0.0
    %369 = vmatprep.subr.mxu0 0.0
    %370 = vmatpush1.msra.mxu0 0.0
    %371 = vmatprep.subr.mxu0 0.0
    %372 = vmatpush1.msra.mxu0 0.0
    %373 = vmatprep.subr.mxu0 0.0
    %374 = vmatpush1.msra.mxu0 0.0
    %375 = vmatprep.subr.mxu0 0.0
    %v376 = vand.u32 %v43, 4294901760
    %v377 = vsub.f32 %v43, %v376
    %v378 = vand.u32 %v377, 4294901760
    %379 = vmatpush1.msra.mxu0 %v378
    %380 = vmatprep.subr.mxu0 0.0
    %381 = vmatpush2.msra.mxu0 0.0
    %382 = vmatprep.subr.mxu0 0.0
    %383 = vmatpush2.msra.mxu0 0.0
    %384 = vmatprep.subr.mxu0 0.0
    %385 = vmatpush2.msra.mxu0 0.0
    %386 = vmatprep.subr.mxu0 0.0
    %387 = vmatpush2.msra.mxu0 0.0
    %388 = vmatprep.subr.mxu0 0.0
    %389 = vmatpush2.msra.mxu0 0.0
    %390 = vmatprep.subr.mxu0 0.0
    %391 = vmatpush2.msra.mxu0 0.0
    %392 = vmatprep.subr.mxu0 0.0
    %393 = vmatpush2.msra.mxu0 0.0
    %394 = vmatprep.subr.mxu0 0.0
    %395 = vmatpush2.msra.mxu0 0.0
    %396 = vmatprep.subr.mxu0 0.0
    %397 = vmatpush2.msra.mxu0 0.0
    %398 = vmatprep.subr.mxu0 0.0
    %399 = vmatpush2.msra.mxu0 0.0
    %400 = vmatprep.subr.mxu0 0.0
    %401 = vmatpush2.msra.mxu0 0.0
    %402 = vmatprep.subr.mxu0 0.0
    %403 = vmatpush2.msra.mxu0 0.0
    %404 = vmatprep.subr.mxu0 0.0
    %405 = vmatpush2.msra.mxu0 0.0
    %406 = vmatprep.subr.mxu0 0.0
    %407 = vmatpush2.msra.mxu0 0.0
    %408 = vmatprep.subr.mxu0 0.0
    %409 = vmatpush2.msra.mxu0 0.0
    %410 = vmatprep.subr.mxu0 0.0
    %411 = vmatpush2.msra.mxu0 0.0
    %412 = vmatprep.mubr.f32.mxu0 0.0
    %v413 = vand.u32 %v39, 4294901760
    %414 = vmatmul.mubr.f32.gmra.mxu0 %v413
    %v415 = vpop.f32.mrf.mxu0
    %v416 = vadd.f32 %v342, %v415
    %v417 = vpop.f32.mrf.mxu0
    %418 = vdwg.mxu0
    %419 = vmatprep.subr.mxu0 0.0
    %420 = vmatpush1.msra.mxu0 0.0
    %421 = vmatprep.subr.mxu0 0.0
    %422 = vmatpush1.msra.mxu0 0.0
    %423 = vmatprep.subr.mxu0 0.0
    %424 = vmatpush1.msra.mxu0 0.0
    %425 = vmatprep.subr.mxu0 0.0
    %426 = vmatpush1.msra.mxu0 0.0
    %427 = vmatprep.subr.mxu0 0.0
    %428 = vmatpush1.msra.mxu0 0.0
    %429 = vmatprep.subr.mxu0 0.0
    %430 = vmatpush1.msra.mxu0 0.0
    %431 = vmatprep.subr.mxu0 0.0
    %432 = vmatpush1.msra.mxu0 0.0
    %433 = vmatprep.subr.mxu0 0.0
    %434 = vmatpush1.msra.mxu0 0.0
    %435 = vmatprep.subr.mxu0 0.0
    %436 = vmatpush1.msra.mxu0 0.0
    %437 = vmatprep.subr.mxu0 0.0
    %438 = vmatpush1.msra.mxu0 0.0
    %439 = vmatprep.subr.mxu0 0.0
    %440 = vmatpush1.msra.mxu0 0.0
    %441 = vmatprep.subr.mxu0 0.0
    %442 = vmatpush1.msra.mxu0 0.0
    %443 = vmatprep.subr.mxu0 0.0
    %444 = vmatpush1.msra.mxu0 0.0
    %445 = vmatprep.subr.mxu0 0.0
    %446 = vmatpush1.msra.mxu0 0.0
    %447 = vmatprep.subr.mxu0 0.0
    %448 = vmatpush1.msra.mxu0 0.0
    %449 = vmatprep.subr.mxu0 0.0
    %v450 = vand.u32 %v43, 4294901760
    %451 = vmatpush1.msra.mxu0 %v450
    %452 = vmatprep.subr.mxu0 0.0
    %453 = vmatpush2.msra.mxu0 0.0
    %454 = vmatprep.subr.mxu0 0.0
    %455 = vmatpush2.msra.mxu0 0.0
    %456 = vmatprep.subr.mxu0 0.0
    %457 = vmatpush2.msra.mxu0 0.0
    %458 = vmatprep.subr.mxu0 0.0
    %459 = vmatpush2.msra.mxu0 0.0
    %460 = vmatprep.subr.mxu0 0.0
    %461 = vmatpush2.msra.mxu0 0.0
    %462 = vmatprep.subr.mxu0 0.0
    %463 = vmatpush2.msra.mxu0 0.0
    %464 = vmatprep.subr.mxu0 0.0
    %465 = vmatpush2.msra.mxu0 0.0
    %466 = vmatprep.subr.mxu0 0.0
    %467 = vmatpush2.msra.mxu0 0.0
    %468 = vmatprep.subr.mxu0 0.0
    %469 = vmatpush2.msra.mxu0 0.0
    %470 = vmatprep.subr.mxu0 0.0
    %471 = vmatpush2.msra.mxu0 0.0
    %472 = vmatprep.subr.mxu0 0.0
    %473 = vmatpush2.msra.mxu0 0.0
    %474 = vmatprep.subr.mxu0 0.0
    %475 = vmatpush2.msra.mxu0 0.0
    %476 = vmatprep.subr.mxu0 0.0
    %477 = vmatpush2.msra.mxu0 0.0
    %478 = vmatprep.subr.mxu0 0.0
    %479 = vmatpush2.msra.mxu0 0.0
    %480 = vmatprep.subr.mxu0 0.0
    %481 = vmatpush2.msra.mxu0 0.0
    %482 = vmatprep.subr.mxu0 0.0
    %483 = vmatpush2.msra.mxu0 0.0
    %484 = vmatprep.mubr.f32.mxu0 0.0
    %v485 = vand.u32 %v39, 4294901760
    %486 = vmatmul.mubr.f32.gmra.mxu0 %v485
    %v487 = vpop.f32.mrf.mxu0
    %v488 = vadd.f32 %v416, %v487
    %v489 = vpop.f32.mrf.mxu0
    %490 = vdwg.mxu0
    %v491 = vmax.f32 %v488, 0.0
    %s492 = scalar_lea.vmem [#allocation2], 128
    %v493 = vld [vmem:[%s492] sm:$0xff]
    %v494 = vld [vmem:[%s492 + $0x8] sm:$0xff]
    %v495 = vld [vmem:[%s492 + $0x10] sm:$0xff]
    %v496 = vld [vmem:[%s492 + $0x18] sm:$0xff]
    %v497 = vld [vmem:[%s492 + $0x20] sm:$0xff]
    %v498 = vld [vmem:[%s492 + $0x28] sm:$0xff]
    %v499 = vld [vmem:[%s492 + $0x30] sm:$0xff]
    %v500 = vld [vmem:[%s492 + $0x38] sm:$0xff]
    %v501 = vld [vmem:[%s492 + $0x40] sm:$0xff]
    %v502 = vld [vmem:[%s492 + $0x48] sm:$0xff]
    %v503 = vld [vmem:[%s492 + $0x50] sm:$0xff]
    %v504 = vld [vmem:[%s492 + $0x58] sm:$0xff]
    %v505 = vld [vmem:[%s492 + $0x60] sm:$0xff]
    %v506 = vld [vmem:[%s492 + $0x68] sm:$0xff]
    %v507 = vld [vmem:[%s492 + $0x70] sm:$0xff]
    %v508 = vld [vmem:[%s492 + $0x78] sm:$0xff]
    %s509 = scalar_lea.vmem %s2, 1
    %v510 = vld [vmem:[%s509] sm:$0x1]
    %v512 = vlaneseq
    %v513 = vshrl.u32 %v512, 7
    %v514 = vsub.s32 0, %v513
    %v515 = vrot.slane %v510, %v514
    %517 = vmatprep.subr.mxu0 0.0
    %v518 = vand.u32 %v508, 4294901760
    %519 = vmatpush1.msra.mxu0 %v518
    %520 = vmatprep.subr.mxu0 0.0
    %v521 = vand.u32 %v507, 4294901760
    %522 = vmatpush1.msra.mxu0 %v521
    %523 = vmatprep.subr.mxu0 0.0
    %v524 = vand.u32 %v506, 4294901760
    %525 = vmatpush1.msra.mxu0 %v524
    %526 = vmatprep.subr.mxu0 0.0
    %v527 = vand.u32 %v505, 4294901760
    %528 = vmatpush1.msra.mxu0 %v527
    %529 = vmatprep.subr.mxu0 0.0
    %v530 = vand.u32 %v504, 4294901760
    %531 = vmatpush1.msra.mxu0 %v530
    %532 = vmatprep.subr.mxu0 0.0
    %v533 = vand.u32 %v503, 4294901760
    %534 = vmatpush1.msra.mxu0 %v533
    %535 = vmatprep.subr.mxu0 0.0
    %v536 = vand.u32 %v502, 4294901760
    %537 = vmatpush1.msra.mxu0 %v536
    %538 = vmatprep.subr.mxu0 0.0
    %v539 = vand.u32 %v501, 4294901760
    %540 = vmatpush1.msra.mxu0 %v539
    %541 = vmatprep.subr.mxu0 0.0
    %v542 = vand.u32 %v500, 4294901760
    %543 = vmatpush1.msra.mxu0 %v542
    %544 = vmatprep.subr.mxu0 0.0
    %v545 = vand.u32 %v499, 4294901760
    %546 = vmatpush1.msra.mxu0 %v545
    %547 = vmatprep.subr.mxu0 0.0
    %v548 = vand.u32 %v498, 4294901760
    %549 = vmatpush1.msra.mxu0 %v548
    %550 = vmatprep.subr.mxu0 0.0
    %v551 = vand.u32 %v497, 4294901760
    %552 = vmatpush1.msra.mxu0 %v551
    %553 = vmatprep.subr.mxu0 0.0
    %v554 = vand.u32 %v496, 4294901760
    %555 = vmatpush1.msra.mxu0 %v554
    %556 = vmatprep.subr.mxu0 0.0
    %v557 = vand.u32 %v495, 4294901760
    %558 = vmatpush1.msra.mxu0 %v557
    %559 = vmatprep.subr.mxu0 0.0
    %v560 = vand.u32 %v494, 4294901760
    %561 = vmatpush1.msra.mxu0 %v560
    %562 = vmatprep.subr.mxu0 0.0
    %v563 = vand.u32 %v493, 4294901760
    %564 = vmatpush1.msra.mxu0 %v563
    %565 = vmatprep.subr.mxu0 0.0
    %566 = vmatpush2.msra.mxu0 0.0
    %567 = vmatprep.subr.mxu0 0.0
    %568 = vmatpush2.msra.mxu0 0.0
    %569 = vmatprep.subr.mxu0 0.0
    %570 = vmatpush2.msra.mxu0 0.0
    %571 = vmatprep.subr.mxu0 0.0
    %572 = vmatpush2.msra.mxu0 0.0
    %573 = vmatprep.subr.mxu0 0.0
    %574 = vmatpush2.msra.mxu0 0.0
    %575 = vmatprep.subr.mxu0 0.0
    %576 = vmatpush2.msra.mxu0 0.0
    %577 = vmatprep.subr.mxu0 0.0
    %578 = vmatpush2.msra.mxu0 0.0
    %579 = vmatprep.subr.mxu0 0.0
    %580 = vmatpush2.msra.mxu0 0.0
    %581 = vmatprep.subr.mxu0 0.0
    %582 = vmatpush2.msra.mxu0 0.0
    %583 = vmatprep.subr.mxu0 0.0
    %584 = vmatpush2.msra.mxu0 0.0
    %585 = vmatprep.subr.mxu0 0.0
    %586 = vmatpush2.msra.mxu0 0.0
    %587 = vmatprep.subr.mxu0 0.0
    %588 = vmatpush2.msra.mxu0 0.0
    %589 = vmatprep.subr.mxu0 0.0
    %590 = vmatpush2.msra.mxu0 0.0
    %591 = vmatprep.subr.mxu0 0.0
    %592 = vmatpush2.msra.mxu0 0.0
    %593 = vmatprep.subr.mxu0 0.0
    %594 = vmatpush2.msra.mxu0 0.0
    %595 = vmatprep.subr.mxu0 0.0
    %596 = vmatpush2.msra.mxu0 0.0
    %597 = vmatprep.mubr.f32.mxu0 0.0
    %v598 = vand.u32 %v491, 4294901760
    %v599 = vsub.f32 %v491, %v598
    %v600 = vand.u32 %v599, 4294901760
    %v601 = vsub.f32 %v599, %v600
    %v602 = vand.u32 %v601, 4294901760
    %603 = vmatmul.mubr.f32.gmra.mxu0 %v602
    %v604 = vpop.f32.mrf.mxu0
    %v605 = vadd.f32 %v515, %v604
    %v606 = vpop.f32.mrf.mxu0
    %607 = vdwg.mxu0
    %608 = vmatprep.subr.mxu0 0.0
    %v609 = vand.u32 %v508, 4294901760
    %v610 = vsub.f32 %v508, %v609
    %v611 = vand.u32 %v610, 4294901760
    %v612 = vsub.f32 %v610, %v611
    %v613 = vand.u32 %v612, 4294901760
    %614 = vmatpush1.msra.mxu0 %v613
    %615 = vmatprep.subr.mxu0 0.0
    %v616 = vand.u32 %v507, 4294901760
    %v617 = vsub.f32 %v507, %v616
    %v618 = vand.u32 %v617, 4294901760
    %v619 = vsub.f32 %v617, %v618
    %v620 = vand.u32 %v619, 4294901760
    %621 = vmatpush1.msra.mxu0 %v620
    %622 = vmatprep.subr.mxu0 0.0
    %v623 = vand.u32 %v506, 4294901760
    %v624 = vsub.f32 %v506, %v623
    %v625 = vand.u32 %v624, 4294901760
    %v626 = vsub.f32 %v624, %v625
    %v627 = vand.u32 %v626, 4294901760
    %628 = vmatpush1.msra.mxu0 %v627
    %629 = vmatprep.subr.mxu0 0.0
    %v630 = vand.u32 %v505, 4294901760
    %v631 = vsub.f32 %v505, %v630
    %v632 = vand.u32 %v631, 4294901760
    %v633 = vsub.f32 %v631, %v632
    %v634 = vand.u32 %v633, 4294901760
    %635 = vmatpush1.msra.mxu0 %v634
    %636 = vmatprep.subr.mxu0 0.0
    %v637 = vand.u32 %v504, 4294901760
    %v638 = vsub.f32 %v504, %v637
    %v639 = vand.u32 %v638, 4294901760
    %v640 = vsub.f32 %v638, %v639
    %v641 = vand.u32 %v640, 4294901760
    %642 = vmatpush1.msra.mxu0 %v641
    %643 = vmatprep.subr.mxu0 0.0
    %v644 = vand.u32 %v503, 4294901760
    %v645 = vsub.f32 %v503, %v644
    %v646 = vand.u32 %v645, 4294901760
    %v647 = vsub.f32 %v645, %v646
    %v648 = vand.u32 %v647, 4294901760
    %649 = vmatpush1.msra.mxu0 %v648
    %650 = vmatprep.subr.mxu0 0.0
    %v651 = vand.u32 %v502, 4294901760
    %v652 = vsub.f32 %v502, %v651
    %v653 = vand.u32 %v652, 4294901760
    %v654 = vsub.f32 %v652, %v653
    %v655 = vand.u32 %v654, 4294901760
    %656 = vmatpush1.msra.mxu0 %v655
    %657 = vmatprep.subr.mxu0 0.0
    %v658 = vand.u32 %v501, 4294901760
    %v659 = vsub.f32 %v501, %v658
    %v660 = vand.u32 %v659, 4294901760
    %v661 = vsub.f32 %v659, %v660
    %v662 = vand.u32 %v661, 4294901760
    %663 = vmatpush1.msra.mxu0 %v662
    %664 = vmatprep.subr.mxu0 0.0
    %v665 = vand.u32 %v500, 4294901760
    %v666 = vsub.f32 %v500, %v665
    %v667 = vand.u32 %v666, 4294901760
    %v668 = vsub.f32 %v666, %v667
    %v669 = vand.u32 %v668, 4294901760
    %670 = vmatpush1.msra.mxu0 %v669
    %671 = vmatprep.subr.mxu0 0.0
    %v672 = vand.u32 %v499, 4294901760
    %v673 = vsub.f32 %v499, %v672
    %v674 = vand.u32 %v673, 4294901760
    %v675 = vsub.f32 %v673, %v674
    %v676 = vand.u32 %v675, 4294901760
    %677 = vmatpush1.msra.mxu0 %v676
    %678 = vmatprep.subr.mxu0 0.0
    %v679 = vand.u32 %v498, 4294901760
    %v680 = vsub.f32 %v498, %v679
    %v681 = vand.u32 %v680, 4294901760
    %v682 = vsub.f32 %v680, %v681
    %v683 = vand.u32 %v682, 4294901760
    %684 = vmatpush1.msra.mxu0 %v683
    %685 = vmatprep.subr.mxu0 0.0
    %v686 = vand.u32 %v497, 4294901760
    %v687 = vsub.f32 %v497, %v686
    %v688 = vand.u32 %v687, 4294901760
    %v689 = vsub.f32 %v687, %v688
    %v690 = vand.u32 %v689, 4294901760
    %691 = vmatpush1.msra.mxu0 %v690
    %692 = vmatprep.subr.mxu0 0.0
    %v693 = vand.u32 %v496, 4294901760
    %v694 = vsub.f32 %v496, %v693
    %v695 = vand.u32 %v694, 4294901760
    %v696 = vsub.f32 %v694, %v695
    %v697 = vand.u32 %v696, 4294901760
    %698 = vmatpush1.msra.mxu0 %v697
    %699 = vmatprep.subr.mxu0 0.0
    %v700 = vand.u32 %v495, 4294901760
    %v701 = vsub.f32 %v495, %v700
    %v702 = vand.u32 %v701, 4294901760
    %v703 = vsub.f32 %v701, %v702
    %v704 = vand.u32 %v703, 4294901760
    %705 = vmatpush1.msra.mxu0 %v704
    %706 = vmatprep.subr.mxu0 0.0
    %v707 = vand.u32 %v494, 4294901760
    %v708 = vsub.f32 %v494, %v707
    %v709 = vand.u32 %v708, 4294901760
    %v710 = vsub.f32 %v708, %v709
    %v711 = vand.u32 %v710, 4294901760
    %712 = vmatpush1.msra.mxu0 %v711
    %713 = vmatprep.subr.mxu0 0.0
    %v714 = vand.u32 %v493, 4294901760
    %v715 = vsub.f32 %v493, %v714
    %v716 = vand.u32 %v715, 4294901760
    %v717 = vsub.f32 %v715, %v716
    %v718 = vand.u32 %v717, 4294901760
    %719 = vmatpush1.msra.mxu0 %v718
    %720 = vmatprep.subr.mxu0 0.0
    %721 = vmatpush2.msra.mxu0 0.0
    %722 = vmatprep.subr.mxu0 0.0
    %723 = vmatpush2.msra.mxu0 0.0
    %724 = vmatprep.subr.mxu0 0.0
    %725 = vmatpush2.msra.mxu0 0.0
    %726 = vmatprep.subr.mxu0 0.0
    %727 = vmatpush2.msra.mxu0 0.0
    %728 = vmatprep.subr.mxu0 0.0
    %729 = vmatpush2.msra.mxu0 0.0
    %730 = vmatprep.subr.mxu0 0.0
    %731 = vmatpush2.msra.mxu0 0.0
    %732 = vmatprep.subr.mxu0 0.0
    %733 = vmatpush2.msra.mxu0 0.0
    %734 = vmatprep.subr.mxu0 0.0
    %735 = vmatpush2.msra.mxu0 0.0
    %736 = vmatprep.subr.mxu0 0.0
    %737 = vmatpush2.msra.mxu0 0.0
    %738 = vmatprep.subr.mxu0 0.0
    %739 = vmatpush2.msra.mxu0 0.0
    %740 = vmatprep.subr.mxu0 0.0
    %741 = vmatpush2.msra.mxu0 0.0
    %742 = vmatprep.subr.mxu0 0.0
    %743 = vmatpush2.msra.mxu0 0.0
    %744 = vmatprep.subr.mxu0 0.0
    %745 = vmatpush2.msra.mxu0 0.0
    %746 = vmatprep.subr.mxu0 0.0
    %747 = vmatpush2.msra.mxu0 0.0
    %748 = vmatprep.subr.mxu0 0.0
    %749 = vmatpush2.msra.mxu0 0.0
    %750 = vmatprep.subr.mxu0 0.0
    %751 = vmatpush2.msra.mxu0 0.0
    %752 = vmatprep.mubr.f32.mxu0 0.0
    %v753 = vand.u32 %v491, 4294901760
    %754 = vmatmul.mubr.f32.gmra.mxu0 %v753
    %v755 = vpop.f32.mrf.mxu0
    %v756 = vadd.f32 %v605, %v755
    %v757 = vpop.f32.mrf.mxu0
    %758 = vdwg.mxu0
    %759 = vmatprep.subr.mxu0 0.0
    %v760 = vand.u32 %v508, 4294901760
    %v761 = vsub.f32 %v508, %v760
    %762 = vmatpush1.msra.mxu0 %v761
    %763 = vmatprep.subr.mxu0 0.0
    %v764 = vand.u32 %v507, 4294901760
    %v765 = vsub.f32 %v507, %v764
    %766 = vmatpush1.msra.mxu0 %v765
    %767 = vmatprep.subr.mxu0 0.0
    %v768 = vand.u32 %v506, 4294901760
    %v769 = vsub.f32 %v506, %v768
    %770 = vmatpush1.msra.mxu0 %v769
    %771 = vmatprep.subr.mxu0 0.0
    %v772 = vand.u32 %v505, 4294901760
    %v773 = vsub.f32 %v505, %v772
    %774 = vmatpush1.msra.mxu0 %v773
    %775 = vmatprep.subr.mxu0 0.0
    %v776 = vand.u32 %v504, 4294901760
    %v777 = vsub.f32 %v504, %v776
    %778 = vmatpush1.msra.mxu0 %v777
    %779 = vmatprep.subr.mxu0 0.0
    %v780 = vand.u32 %v503, 4294901760
    %v781 = vsub.f32 %v503, %v780
    %782 = vmatpush1.msra.mxu0 %v781
    %783 = vmatprep.subr.mxu0 0.0
    %v784 = vand.u32 %v502, 4294901760
    %v785 = vsub.f32 %v502, %v784
    %786 = vmatpush1.msra.mxu0 %v785
    %787 = vmatprep.subr.mxu0 0.0
    %v788 = vand.u32 %v501, 4294901760
    %v789 = vsub.f32 %v501, %v788
    %790 = vmatpush1.msra.mxu0 %v789
    %791 = vmatprep.subr.mxu0 0.0
    %v792 = vand.u32 %v500, 4294901760
    %v793 = vsub.f32 %v500, %v792
    %794 = vmatpush1.msra.mxu0 %v793
    %795 = vmatprep.subr.mxu0 0.0
    %v796 = vand.u32 %v499, 4294901760
    %v797 = vsub.f32 %v499, %v796
    %798 = vmatpush1.msra.mxu0 %v797
    %799 = vmatprep.subr.mxu0 0.0
    %v800 = vand.u32 %v498, 4294901760
    %v801 = vsub.f32 %v498, %v800
    %802 = vmatpush1.msra.mxu0 %v801
    %803 = vmatprep.subr.mxu0 0.0
    %v804 = vand.u32 %v497, 4294901760
    %v805 = vsub.f32 %v497, %v804
    %806 = vmatpush1.msra.mxu0 %v805
    %807 = vmatprep.subr.mxu0 0.0
    %v808 = vand.u32 %v496, 4294901760
    %v809 = vsub.f32 %v496, %v808
    %810 = vmatpush1.msra.mxu0 %v809
    %811 = vmatprep.subr.mxu0 0.0
    %v812 = vand.u32 %v495, 4294901760
    %v813 = vsub.f32 %v495, %v812
    %814 = vmatpush1.msra.mxu0 %v813
    %815 = vmatprep.subr.mxu0 0.0
    %v816 = vand.u32 %v494, 4294901760
    %v817 = vsub.f32 %v494, %v816
    %818 = vmatpush1.msra.mxu0 %v817
    %819 = vmatprep.subr.mxu0 0.0
    %v820 = vand.u32 %v493, 4294901760
    %v821 = vsub.f32 %v493, %v820
    %822 = vmatpush1.msra.mxu0 %v821
    %823 = vmatprep.subr.mxu0 0.0
    %824 = vmatpush2.msra.mxu0 0.0
    %825 = vmatprep.subr.mxu0 0.0
    %826 = vmatpush2.msra.mxu0 0.0
    %827 = vmatprep.subr.mxu0 0.0
    %828 = vmatpush2.msra.mxu0 0.0
    %829 = vmatprep.subr.mxu0 0.0
    %830 = vmatpush2.msra.mxu0 0.0
    %831 = vmatprep.subr.mxu0 0.0
    %832 = vmatpush2.msra.mxu0 0.0
    %833 = vmatprep.subr.mxu0 0.0
    %834 = vmatpush2.msra.mxu0 0.0
    %835 = vmatprep.subr.mxu0 0.0
    %836 = vmatpush2.msra.mxu0 0.0
    %837 = vmatprep.subr.mxu0 0.0
    %838 = vmatpush2.msra.mxu0 0.0
    %839 = vmatprep.subr.mxu0 0.0
    %840 = vmatpush2.msra.mxu0 0.0
    %841 = vmatprep.subr.mxu0 0.0
    %842 = vmatpush2.msra.mxu0 0.0
    %843 = vmatprep.subr.mxu0 0.0
    %844 = vmatpush2.msra.mxu0 0.0
    %845 = vmatprep.subr.mxu0 0.0
    %846 = vmatpush2.msra.mxu0 0.0
    %847 = vmatprep.subr.mxu0 0.0
    %848 = vmatpush2.msra.mxu0 0.0
    %849 = vmatprep.subr.mxu0 0.0
    %850 = vmatpush2.msra.mxu0 0.0
    %851 = vmatprep.subr.mxu0 0.0
    %852 = vmatpush2.msra.mxu0 0.0
    %853 = vmatprep.subr.mxu0 0.0
    %854 = vmatpush2.msra.mxu0 0.0
    %855 = vmatprep.mubr.f32.mxu0 0.0
    %v856 = vand.u32 %v491, 4294901760
    %v857 = vsub.f32 %v491, %v856
    %858 = vmatmul.mubr.f32.gmra.mxu0 %v857
    %v859 = vpop.f32.mrf.mxu0
    %v860 = vadd.f32 %v756, %v859
    %v861 = vpop.f32.mrf.mxu0
    %862 = vdwg.mxu0
    %863 = vmatprep.subr.mxu0 0.0
    %v864 = vand.u32 %v508, 4294901760
    %865 = vmatpush1.msra.mxu0 %v864
    %866 = vmatprep.subr.mxu0 0.0
    %v867 = vand.u32 %v507, 4294901760
    %868 = vmatpush1.msra.mxu0 %v867
    %869 = vmatprep.subr.mxu0 0.0
    %v870 = vand.u32 %v506, 4294901760
    %871 = vmatpush1.msra.mxu0 %v870
    %872 = vmatprep.subr.mxu0 0.0
    %v873 = vand.u32 %v505, 4294901760
    %874 = vmatpush1.msra.mxu0 %v873
    %875 = vmatprep.subr.mxu0 0.0
    %v876 = vand.u32 %v504, 4294901760
    %877 = vmatpush1.msra.mxu0 %v876
    %878 = vmatprep.subr.mxu0 0.0
    %v879 = vand.u32 %v503, 4294901760
    %880 = vmatpush1.msra.mxu0 %v879
    %881 = vmatprep.subr.mxu0 0.0
    %v882 = vand.u32 %v502, 4294901760
    %883 = vmatpush1.msra.mxu0 %v882
    %884 = vmatprep.subr.mxu0 0.0
    %v885 = vand.u32 %v501, 4294901760
    %886 = vmatpush1.msra.mxu0 %v885
    %887 = vmatprep.subr.mxu0 0.0
    %v888 = vand.u32 %v500, 4294901760
    %889 = vmatpush1.msra.mxu0 %v888
    %890 = vmatprep.subr.mxu0 0.0
    %v891 = vand.u32 %v499, 4294901760
    %892 = vmatpush1.msra.mxu0 %v891
    %893 = vmatprep.subr.mxu0 0.0
    %v894 = vand.u32 %v498, 4294901760
    %895 = vmatpush1.msra.mxu0 %v894
    %896 = vmatprep.subr.mxu0 0.0
    %v897 = vand.u32 %v497, 4294901760
    %898 = vmatpush1.msra.mxu0 %v897
    %899 = vmatprep.subr.mxu0 0.0
    %v900 = vand.u32 %v496, 4294901760
    %901 = vmatpush1.msra.mxu0 %v900
    %902 = vmatprep.subr.mxu0 0.0
    %v903 = vand.u32 %v495, 4294901760
    %904 = vmatpush1.msra.mxu0 %v903
    %905 = vmatprep.subr.mxu0 0.0
    %v906 = vand.u32 %v494, 4294901760
    %907 = vmatpush1.msra.mxu0 %v906
    %908 = vmatprep.subr.mxu0 0.0
    %v909 = vand.u32 %v493, 4294901760
    %910 = vmatpush1.msra.mxu0 %v909
    %911 = vmatprep.subr.mxu0 0.0
    %912 = vmatpush2.msra.mxu0 0.0
    %913 = vmatprep.subr.mxu0 0.0
    %914 = vmatpush2.msra.mxu0 0.0
    %915 = vmatprep.subr.mxu0 0.0
    %916 = vmatpush2.msra.mxu0 0.0
    %917 = vmatprep.subr.mxu0 0.0
    %918 = vmatpush2.msra.mxu0 0.0
    %919 = vmatprep.subr.mxu0 0.0
    %920 = vmatpush2.msra.mxu0 0.0
    %921 = vmatprep.subr.mxu0 0.0
    %922 = vmatpush2.msra.mxu0 0.0
    %923 = vmatprep.subr.mxu0 0.0
    %924 = vmatpush2.msra.mxu0 0.0
    %925 = vmatprep.subr.mxu0 0.0
    %926 = vmatpush2.msra.mxu0 0.0
    %927 = vmatprep.subr.mxu0 0.0
    %928 = vmatpush2.msra.mxu0 0.0
    %929 = vmatprep.subr.mxu0 0.0
    %930 = vmatpush2.msra.mxu0 0.0
    %931 = vmatprep.subr.mxu0 0.0
    %932 = vmatpush2.msra.mxu0 0.0
    %933 = vmatprep.subr.mxu0 0.0
    %934 = vmatpush2.msra.mxu0 0.0
    %935 = vmatprep.subr.mxu0 0.0
    %936 = vmatpush2.msra.mxu0 0.0
    %937 = vmatprep.subr.mxu0 0.0
    %938 = vmatpush2.msra.mxu0 0.0
    %939 = vmatprep.subr.mxu0 0.0
    %940 = vmatpush2.msra.mxu0 0.0
    %941 = vmatprep.subr.mxu0 0.0
    %942 = vmatpush2.msra.mxu0 0.0
    %943 = vmatprep.mubr.f32.mxu0 0.0
    %v944 = vand.u32 %v491, 4294901760
    %v945 = vsub.f32 %v491, %v944
    %v946 = vand.u32 %v945, 4294901760
    %947 = vmatmul.mubr.f32.gmra.mxu0 %v946
    %v948 = vpop.f32.mrf.mxu0
    %v949 = vadd.f32 %v860, %v948
    %v950 = vpop.f32.mrf.mxu0
    %951 = vdwg.mxu0
    %952 = vmatprep.subr.mxu0 0.0
    %v953 = vand.u32 %v508, 4294901760
    %v954 = vsub.f32 %v508, %v953
    %v955 = vand.u32 %v954, 4294901760
    %956 = vmatpush1.msra.mxu0 %v955
    %957 = vmatprep.subr.mxu0 0.0
    %v958 = vand.u32 %v507, 4294901760
    %v959 = vsub.f32 %v507, %v958
    %v960 = vand.u32 %v959, 4294901760
    %961 = vmatpush1.msra.mxu0 %v960
    %962 = vmatprep.subr.mxu0 0.0
    %v963 = vand.u32 %v506, 4294901760
    %v964 = vsub.f32 %v506, %v963
    %v965 = vand.u32 %v964, 4294901760
    %966 = vmatpush1.msra.mxu0 %v965
    %967 = vmatprep.subr.mxu0 0.0
    %v968 = vand.u32 %v505, 4294901760
    %v969 = vsub.f32 %v505, %v968
    %v970 = vand.u32 %v969, 4294901760
    %971 = vmatpush1.msra.mxu0 %v970
    %972 = vmatprep.subr.mxu0 0.0
    %v973 = vand.u32 %v504, 4294901760
    %v974 = vsub.f32 %v504, %v973
    %v975 = vand.u32 %v974, 4294901760
    %976 = vmatpush1.msra.mxu0 %v975
    %977 = vmatprep.subr.mxu0 0.0
    %v978 = vand.u32 %v503, 4294901760
    %v979 = vsub.f32 %v503, %v978
    %v980 = vand.u32 %v979, 4294901760
    %981 = vmatpush1.msra.mxu0 %v980
    %982 = vmatprep.subr.mxu0 0.0
    %v983 = vand.u32 %v502, 4294901760
    %v984 = vsub.f32 %v502, %v983
    %v985 = vand.u32 %v984, 4294901760
    %986 = vmatpush1.msra.mxu0 %v985
    %987 = vmatprep.subr.mxu0 0.0
    %v988 = vand.u32 %v501, 4294901760
    %v989 = vsub.f32 %v501, %v988
    %v990 = vand.u32 %v989, 4294901760
    %991 = vmatpush1.msra.mxu0 %v990
    %992 = vmatprep.subr.mxu0 0.0
    %v993 = vand.u32 %v500, 4294901760
    %v994 = vsub.f32 %v500, %v993
    %v995 = vand.u32 %v994, 4294901760
    %996 = vmatpush1.msra.mxu0 %v995
    %997 = vmatprep.subr.mxu0 0.0
    %v998 = vand.u32 %v499, 4294901760
    %v999 = vsub.f32 %v499, %v998
    %v1000 = vand.u32 %v999, 4294901760
    %1001 = vmatpush1.msra.mxu0 %v1000
    %1002 = vmatprep.subr.mxu0 0.0
    %v1003 = vand.u32 %v498, 4294901760
    %v1004 = vsub.f32 %v498, %v1003
    %v1005 = vand.u32 %v1004, 4294901760
    %1006 = vmatpush1.msra.mxu0 %v1005
    %1007 = vmatprep.subr.mxu0 0.0
    %v1008 = vand.u32 %v497, 4294901760
    %v1009 = vsub.f32 %v497, %v1008
    %v1010 = vand.u32 %v1009, 4294901760
    %1011 = vmatpush1.msra.mxu0 %v1010
    %1012 = vmatprep.subr.mxu0 0.0
    %v1013 = vand.u32 %v496, 4294901760
    %v1014 = vsub.f32 %v496, %v1013
    %v1015 = vand.u32 %v1014, 4294901760
    %1016 = vmatpush1.msra.mxu0 %v1015
    %1017 = vmatprep.subr.mxu0 0.0
    %v1018 = vand.u32 %v495, 4294901760
    %v1019 = vsub.f32 %v495, %v1018
    %v1020 = vand.u32 %v1019, 4294901760
    %1021 = vmatpush1.msra.mxu0 %v1020
    %1022 = vmatprep.subr.mxu0 0.0
    %v1023 = vand.u32 %v494, 4294901760
    %v1024 = vsub.f32 %v494, %v1023
    %v1025 = vand.u32 %v1024, 4294901760
    %1026 = vmatpush1.msra.mxu0 %v1025
    %1027 = vmatprep.subr.mxu0 0.0
    %v1028 = vand.u32 %v493, 4294901760
    %v1029 = vsub.f32 %v493, %v1028
    %v1030 = vand.u32 %v1029, 4294901760
    %1031 = vmatpush1.msra.mxu0 %v1030
    %1032 = vmatprep.subr.mxu0 0.0
    %1033 = vmatpush2.msra.mxu0 0.0
    %1034 = vmatprep.subr.mxu0 0.0
    %1035 = vmatpush2.msra.mxu0 0.0
    %1036 = vmatprep.subr.mxu0 0.0
    %1037 = vmatpush2.msra.mxu0 0.0
    %1038 = vmatprep.subr.mxu0 0.0
    %1039 = vmatpush2.msra.mxu0 0.0
    %1040 = vmatprep.subr.mxu0 0.0
    %1041 = vmatpush2.msra.mxu0 0.0
    %1042 = vmatprep.subr.mxu0 0.0
    %1043 = vmatpush2.msra.mxu0 0.0
    %1044 = vmatprep.subr.mxu0 0.0
    %1045 = vmatpush2.msra.mxu0 0.0
    %1046 = vmatprep.subr.mxu0 0.0
    %1047 = vmatpush2.msra.mxu0 0.0
    %1048 = vmatprep.subr.mxu0 0.0
    %1049 = vmatpush2.msra.mxu0 0.0
    %1050 = vmatprep.subr.mxu0 0.0
    %1051 = vmatpush2.msra.mxu0 0.0
    %1052 = vmatprep.subr.mxu0 0.0
    %1053 = vmatpush2.msra.mxu0 0.0
    %1054 = vmatprep.subr.mxu0 0.0
    %1055 = vmatpush2.msra.mxu0 0.0
    %1056 = vmatprep.subr.mxu0 0.0
    %1057 = vmatpush2.msra.mxu0 0.0
    %1058 = vmatprep.subr.mxu0 0.0
    %1059 = vmatpush2.msra.mxu0 0.0
    %1060 = vmatprep.subr.mxu0 0.0
    %1061 = vmatpush2.msra.mxu0 0.0
    %1062 = vmatprep.subr.mxu0 0.0
    %1063 = vmatpush2.msra.mxu0 0.0
    %1064 = vmatprep.mubr.f32.mxu0 0.0
    %v1065 = vand.u32 %v491, 4294901760
    %1066 = vmatmul.mubr.f32.gmra.mxu0 %v1065
    %v1067 = vpop.f32.mrf.mxu0
    %v1068 = vadd.f32 %v949, %v1067
    %v1069 = vpop.f32.mrf.mxu0
    %1070 = vdwg.mxu0
    %1071 = vmatprep.subr.mxu0 0.0
    %v1072 = vand.u32 %v508, 4294901760
    %1073 = vmatpush1.msra.mxu0 %v1072
    %1074 = vmatprep.subr.mxu0 0.0
    %v1075 = vand.u32 %v507, 4294901760
    %1076 = vmatpush1.msra.mxu0 %v1075
    %1077 = vmatprep.subr.mxu0 0.0
    %v1078 = vand.u32 %v506, 4294901760
    %1079 = vmatpush1.msra.mxu0 %v1078
    %1080 = vmatprep.subr.mxu0 0.0
    %v1081 = vand.u32 %v505, 4294901760
    %1082 = vmatpush1.msra.mxu0 %v1081
    %1083 = vmatprep.subr.mxu0 0.0
    %v1084 = vand.u32 %v504, 4294901760
    %1085 = vmatpush1.msra.mxu0 %v1084
    %1086 = vmatprep.subr.mxu0 0.0
    %v1087 = vand.u32 %v503, 4294901760
    %1088 = vmatpush1.msra.mxu0 %v1087
    %1089 = vmatprep.subr.mxu0 0.0
    %v1090 = vand.u32 %v502, 4294901760
    %1091 = vmatpush1.msra.mxu0 %v1090
    %1092 = vmatprep.subr.mxu0 0.0
    %v1093 = vand.u32 %v501, 4294901760
    %1094 = vmatpush1.msra.mxu0 %v1093
    %1095 = vmatprep.subr.mxu0 0.0
    %v1096 = vand.u32 %v500, 4294901760
    %1097 = vmatpush1.msra.mxu0 %v1096
    %1098 = vmatprep.subr.mxu0 0.0
    %v1099 = vand.u32 %v499, 4294901760
    %1100 = vmatpush1.msra.mxu0 %v1099
    %1101 = vmatprep.subr.mxu0 0.0
    %v1102 = vand.u32 %v498, 4294901760
    %1103 = vmatpush1.msra.mxu0 %v1102
    %1104 = vmatprep.subr.mxu0 0.0
    %v1105 = vand.u32 %v497, 4294901760
    %1106 = vmatpush1.msra.mxu0 %v1105
    %1107 = vmatprep.subr.mxu0 0.0
    %v1108 = vand.u32 %v496, 4294901760
    %1109 = vmatpush1.msra.mxu0 %v1108
    %1110 = vmatprep.subr.mxu0 0.0
    %v1111 = vand.u32 %v495, 4294901760
    %1112 = vmatpush1.msra.mxu0 %v1111
    %1113 = vmatprep.subr.mxu0 0.0
    %v1114 = vand.u32 %v494, 4294901760
    %1115 = vmatpush1.msra.mxu0 %v1114
    %1116 = vmatprep.subr.mxu0 0.0
    %v1117 = vand.u32 %v493, 4294901760
    %1118 = vmatpush1.msra.mxu0 %v1117
    %1119 = vmatprep.subr.mxu0 0.0
    %1120 = vmatpush2.msra.mxu0 0.0
    %1121 = vmatprep.subr.mxu0 0.0
    %1122 = vmatpush2.msra.mxu0 0.0
    %1123 = vmatprep.subr.mxu0 0.0
    %1124 = vmatpush2.msra.mxu0 0.0
    %1125 = vmatprep.subr.mxu0 0.0
    %1126 = vmatpush2.msra.mxu0 0.0
    %1127 = vmatprep.subr.mxu0 0.0
    %1128 = vmatpush2.msra.mxu0 0.0
    %1129 = vmatprep.subr.mxu0 0.0
    %1130 = vmatpush2.msra.mxu0 0.0
    %1131 = vmatprep.subr.mxu0 0.0
    %1132 = vmatpush2.msra.mxu0 0.0
    %1133 = vmatprep.subr.mxu0 0.0
    %1134 = vmatpush2.msra.mxu0 0.0
    %1135 = vmatprep.subr.mxu0 0.0
    %1136 = vmatpush2.msra.mxu0 0.0
    %1137 = vmatprep.subr.mxu0 0.0
    %1138 = vmatpush2.msra.mxu0 0.0
    %1139 = vmatprep.subr.mxu0 0.0
    %1140 = vmatpush2.msra.mxu0 0.0
    %1141 = vmatprep.subr.mxu0 0.0
    %1142 = vmatpush2.msra.mxu0 0.0
    %1143 = vmatprep.subr.mxu0 0.0
    %1144 = vmatpush2.msra.mxu0 0.0
    %1145 = vmatprep.subr.mxu0 0.0
    %1146 = vmatpush2.msra.mxu0 0.0
    %1147 = vmatprep.subr.mxu0 0.0
    %1148 = vmatpush2.msra.mxu0 0.0
    %1149 = vmatprep.subr.mxu0 0.0
    %1150 = vmatpush2.msra.mxu0 0.0
    %1151 = vmatprep.mubr.f32.mxu0 0.0
    %v1152 = vand.u32 %v491, 4294901760
    %1153 = vmatmul.mubr.f32.gmra.mxu0 %v1152
    %v1154 = vpop.f32.mrf.mxu0
    %v1155 = vadd.f32 %v1068, %v1154
    %v1156 = vpop.f32.mrf.mxu0
    %1157 = vdwg.mxu0
    %v1158 = vmax.f32 %v1155, 0.0
    %s1159 = scalar_lea.vmem [#allocation2], 256
    %v1160 = vld [vmem:[%s1159] sm:$0xff]
    %v1161 = vld [vmem:[%s1159 + $0x8] sm:$0xff]
    %v1162 = vld [vmem:[%s1159 + $0x10] sm:$0xff]
    %v1163 = vld [vmem:[%s1159 + $0x18] sm:$0xff]
    %v1164 = vld [vmem:[%s1159 + $0x20] sm:$0xff]
    %v1165 = vld [vmem:[%s1159 + $0x28] sm:$0xff]
    %v1166 = vld [vmem:[%s1159 + $0x30] sm:$0xff]
    %v1167 = vld [vmem:[%s1159 + $0x38] sm:$0xff]
    %v1168 = vld [vmem:[%s1159 + $0x40] sm:$0xff]
    %v1169 = vld [vmem:[%s1159 + $0x48] sm:$0xff]
    %v1170 = vld [vmem:[%s1159 + $0x50] sm:$0xff]
    %v1171 = vld [vmem:[%s1159 + $0x58] sm:$0xff]
    %v1172 = vld [vmem:[%s1159 + $0x60] sm:$0xff]
    %v1173 = vld [vmem:[%s1159 + $0x68] sm:$0xff]
    %v1174 = vld [vmem:[%s1159 + $0x70] sm:$0xff]
    %v1175 = vld [vmem:[%s1159 + $0x78] sm:$0xff]
    %s1176 = scalar_lea.vmem %s2, 2
    %v1177 = vld [vmem:[%s1176] sm:$0x1]
    %v1179 = vlaneseq
    %v1180 = vshrl.u32 %v1179, 7
    %v1181 = vsub.s32 0, %v1180
    %v1182 = vrot.slane %v1177, %v1181
    %1184 = vmatprep.subr.mxu0 0.0
    %v1185 = vand.u32 %v1175, 4294901760
    %1186 = vmatpush1.msra.mxu0 %v1185
    %1187 = vmatprep.subr.mxu0 0.0
    %v1188 = vand.u32 %v1174, 4294901760
    %1189 = vmatpush1.msra.mxu0 %v1188
    %1190 = vmatprep.subr.mxu0 0.0
    %v1191 = vand.u32 %v1173, 4294901760
    %1192 = vmatpush1.msra.mxu0 %v1191
    %1193 = vmatprep.subr.mxu0 0.0
    %v1194 = vand.u32 %v1172, 4294901760
    %1195 = vmatpush1.msra.mxu0 %v1194
    %1196 = vmatprep.subr.mxu0 0.0
    %v1197 = vand.u32 %v1171, 4294901760
    %1198 = vmatpush1.msra.mxu0 %v1197
    %1199 = vmatprep.subr.mxu0 0.0
    %v1200 = vand.u32 %v1170, 4294901760
    %1201 = vmatpush1.msra.mxu0 %v1200
    %1202 = vmatprep.subr.mxu0 0.0
    %v1203 = vand.u32 %v1169, 4294901760
    %1204 = vmatpush1.msra.mxu0 %v1203
    %1205 = vmatprep.subr.mxu0 0.0
    %v1206 = vand.u32 %v1168, 4294901760
    %1207 = vmatpush1.msra.mxu0 %v1206
    %1208 = vmatprep.subr.mxu0 0.0
    %v1209 = vand.u32 %v1167, 4294901760
    %1210 = vmatpush1.msra.mxu0 %v1209
    %1211 = vmatprep.subr.mxu0 0.0
    %v1212 = vand.u32 %v1166, 4294901760
    %1213 = vmatpush1.msra.mxu0 %v1212
    %1214 = vmatprep.subr.mxu0 0.0
    %v1215 = vand.u32 %v1165, 4294901760
    %1216 = vmatpush1.msra.mxu0 %v1215
    %1217 = vmatprep.subr.mxu0 0.0
    %v1218 = vand.u32 %v1164, 4294901760
    %1219 = vmatpush1.msra.mxu0 %v1218
    %1220 = vmatprep.subr.mxu0 0.0
    %v1221 = vand.u32 %v1163, 4294901760
    %1222 = vmatpush1.msra.mxu0 %v1221
    %1223 = vmatprep.subr.mxu0 0.0
    %v1224 = vand.u32 %v1162, 4294901760
    %1225 = vmatpush1.msra.mxu0 %v1224
    %1226 = vmatprep.subr.mxu0 0.0
    %v1227 = vand.u32 %v1161, 4294901760
    %1228 = vmatpush1.msra.mxu0 %v1227
    %1229 = vmatprep.subr.mxu0 0.0
    %v1230 = vand.u32 %v1160, 4294901760
    %1231 = vmatpush1.msra.mxu0 %v1230
    %1232 = vmatprep.subr.mxu0 0.0
    %1233 = vmatpush2.msra.mxu0 0.0
    %1234 = vmatprep.subr.mxu0 0.0
    %1235 = vmatpush2.msra.mxu0 0.0
    %1236 = vmatprep.subr.mxu0 0.0
    %1237 = vmatpush2.msra.mxu0 0.0
    %1238 = vmatprep.subr.mxu0 0.0
    %1239 = vmatpush2.msra.mxu0 0.0
    %1240 = vmatprep.subr.mxu0 0.0
    %1241 = vmatpush2.msra.mxu0 0.0
    %1242 = vmatprep.subr.mxu0 0.0
    %1243 = vmatpush2.msra.mxu0 0.0
    %1244 = vmatprep.subr.mxu0 0.0
    %1245 = vmatpush2.msra.mxu0 0.0
    %1246 = vmatprep.subr.mxu0 0.0
    %1247 = vmatpush2.msra.mxu0 0.0
    %1248 = vmatprep.subr.mxu0 0.0
    %1249 = vmatpush2.msra.mxu0 0.0
    %1250 = vmatprep.subr.mxu0 0.0
    %1251 = vmatpush2.msra.mxu0 0.0
    %1252 = vmatprep.subr.mxu0 0.0
    %1253 = vmatpush2.msra.mxu0 0.0
    %1254 = vmatprep.subr.mxu0 0.0
    %1255 = vmatpush2.msra.mxu0 0.0
    %1256 = vmatprep.subr.mxu0 0.0
    %1257 = vmatpush2.msra.mxu0 0.0
    %1258 = vmatprep.subr.mxu0 0.0
    %1259 = vmatpush2.msra.mxu0 0.0
    %1260 = vmatprep.subr.mxu0 0.0
    %1261 = vmatpush2.msra.mxu0 0.0
    %1262 = vmatprep.subr.mxu0 0.0
    %1263 = vmatpush2.msra.mxu0 0.0
    %1264 = vmatprep.mubr.f32.mxu0 0.0
    %v1265 = vand.u32 %v1158, 4294901760
    %v1266 = vsub.f32 %v1158, %v1265
    %v1267 = vand.u32 %v1266, 4294901760
    %v1268 = vsub.f32 %v1266, %v1267
    %v1269 = vand.u32 %v1268, 4294901760
    %1270 = vmatmul.mubr.f32.gmra.mxu0 %v1269
    %v1271 = vpop.f32.mrf.mxu0
    %v1272 = vadd.f32 %v1182, %v1271
    %v1273 = vpop.f32.mrf.mxu0
    %1274 = vdwg.mxu0
    %1275 = vmatprep.subr.mxu0 0.0
    %v1276 = vand.u32 %v1175, 4294901760
    %v1277 = vsub.f32 %v1175, %v1276
    %v1278 = vand.u32 %v1277, 4294901760
    %v1279 = vsub.f32 %v1277, %v1278
    %v1280 = vand.u32 %v1279, 4294901760
    %1281 = vmatpush1.msra.mxu0 %v1280
    %1282 = vmatprep.subr.mxu0 0.0
    %v1283 = vand.u32 %v1174, 4294901760
    %v1284 = vsub.f32 %v1174, %v1283
    %v1285 = vand.u32 %v1284, 4294901760
    %v1286 = vsub.f32 %v1284, %v1285
    %v1287 = vand.u32 %v1286, 4294901760
    %1288 = vmatpush1.msra.mxu0 %v1287
    %1289 = vmatprep.subr.mxu0 0.0
    %v1290 = vand.u32 %v1173, 4294901760
    %v1291 = vsub.f32 %v1173, %v1290
    %v1292 = vand.u32 %v1291, 4294901760
    %v1293 = vsub.f32 %v1291, %v1292
    %v1294 = vand.u32 %v1293, 4294901760
    %1295 = vmatpush1.msra.mxu0 %v1294
    %1296 = vmatprep.subr.mxu0 0.0
    %v1297 = vand.u32 %v1172, 4294901760
    %v1298 = vsub.f32 %v1172, %v1297
    %v1299 = vand.u32 %v1298, 4294901760
    %v1300 = vsub.f32 %v1298, %v1299
    %v1301 = vand.u32 %v1300, 4294901760
    %1302 = vmatpush1.msra.mxu0 %v1301
    %1303 = vmatprep.subr.mxu0 0.0
    %v1304 = vand.u32 %v1171, 4294901760
    %v1305 = vsub.f32 %v1171, %v1304
    %v1306 = vand.u32 %v1305, 4294901760
    %v1307 = vsub.f32 %v1305, %v1306
    %v1308 = vand.u32 %v1307, 4294901760
    %1309 = vmatpush1.msra.mxu0 %v1308
    %1310 = vmatprep.subr.mxu0 0.0
    %v1311 = vand.u32 %v1170, 4294901760
    %v1312 = vsub.f32 %v1170, %v1311
    %v1313 = vand.u32 %v1312, 4294901760
    %v1314 = vsub.f32 %v1312, %v1313
    %v1315 = vand.u32 %v1314, 4294901760
    %1316 = vmatpush1.msra.mxu0 %v1315
    %1317 = vmatprep.subr.mxu0 0.0
    %v1318 = vand.u32 %v1169, 4294901760
    %v1319 = vsub.f32 %v1169, %v1318
    %v1320 = vand.u32 %v1319, 4294901760
    %v1321 = vsub.f32 %v1319, %v1320
    %v1322 = vand.u32 %v1321, 4294901760
    %1323 = vmatpush1.msra.mxu0 %v1322
    %1324 = vmatprep.subr.mxu0 0.0
    %v1325 = vand.u32 %v1168, 4294901760
    %v1326 = vsub.f32 %v1168, %v1325
    %v1327 = vand.u32 %v1326, 4294901760
    %v1328 = vsub.f32 %v1326, %v1327
    %v1329 = vand.u32 %v1328, 4294901760
    %1330 = vmatpush1.msra.mxu0 %v1329
    %1331 = vmatprep.subr.mxu0 0.0
    %v1332 = vand.u32 %v1167, 4294901760
    %v1333 = vsub.f32 %v1167, %v1332
    %v1334 = vand.u32 %v1333, 4294901760
    %v1335 = vsub.f32 %v1333, %v1334
    %v1336 = vand.u32 %v1335, 4294901760
    %1337 = vmatpush1.msra.mxu0 %v1336
    %1338 = vmatprep.subr.mxu0 0.0
    %v1339 = vand.u32 %v1166, 4294901760
    %v1340 = vsub.f32 %v1166, %v1339
    %v1341 = vand.u32 %v1340, 4294901760
    %v1342 = vsub.f32 %v1340, %v1341
    %v1343 = vand.u32 %v1342, 4294901760
    %1344 = vmatpush1.msra.mxu0 %v1343
    %1345 = vmatprep.subr.mxu0 0.0
    %v1346 = vand.u32 %v1165, 4294901760
    %v1347 = vsub.f32 %v1165, %v1346
    %v1348 = vand.u32 %v1347, 4294901760
    %v1349 = vsub.f32 %v1347, %v1348
    %v1350 = vand.u32 %v1349, 4294901760
    %1351 = vmatpush1.msra.mxu0 %v1350
    %1352 = vmatprep.subr.mxu0 0.0
    %v1353 = vand.u32 %v1164, 4294901760
    %v1354 = vsub.f32 %v1164, %v1353
    %v1355 = vand.u32 %v1354, 4294901760
    %v1356 = vsub.f32 %v1354, %v1355
    %v1357 = vand.u32 %v1356, 4294901760
    %1358 = vmatpush1.msra.mxu0 %v1357
    %1359 = vmatprep.subr.mxu0 0.0
    %v1360 = vand.u32 %v1163, 4294901760
    %v1361 = vsub.f32 %v1163, %v1360
    %v1362 = vand.u32 %v1361, 4294901760
    %v1363 = vsub.f32 %v1361, %v1362
    %v1364 = vand.u32 %v1363, 4294901760
    %1365 = vmatpush1.msra.mxu0 %v1364
    %1366 = vmatprep.subr.mxu0 0.0
    %v1367 = vand.u32 %v1162, 4294901760
    %v1368 = vsub.f32 %v1162, %v1367
    %v1369 = vand.u32 %v1368, 4294901760
    %v1370 = vsub.f32 %v1368, %v1369
    %v1371 = vand.u32 %v1370, 4294901760
    %1372 = vmatpush1.msra.mxu0 %v1371
    %1373 = vmatprep.subr.mxu0 0.0
    %v1374 = vand.u32 %v1161, 4294901760
    %v1375 = vsub.f32 %v1161, %v1374
    %v1376 = vand.u32 %v1375, 4294901760
    %v1377 = vsub.f32 %v1375, %v1376
    %v1378 = vand.u32 %v1377, 4294901760
    %1379 = vmatpush1.msra.mxu0 %v1378
    %1380 = vmatprep.subr.mxu0 0.0
    %v1381 = vand.u32 %v1160, 4294901760
    %v1382 = vsub.f32 %v1160, %v1381
    %v1383 = vand.u32 %v1382, 4294901760
    %v1384 = vsub.f32 %v1382, %v1383
    %v1385 = vand.u32 %v1384, 4294901760
    %1386 = vmatpush1.msra.mxu0 %v1385
    %1387 = vmatprep.subr.mxu0 0.0
    %1388 = vmatpush2.msra.mxu0 0.0
    %1389 = vmatprep.subr.mxu0 0.0
    %1390 = vmatpush2.msra.mxu0 0.0
    %1391 = vmatprep.subr.mxu0 0.0
    %1392 = vmatpush2.msra.mxu0 0.0
    %1393 = vmatprep.subr.mxu0 0.0
    %1394 = vmatpush2.msra.mxu0 0.0
    %1395 = vmatprep.subr.mxu0 0.0
    %1396 = vmatpush2.msra.mxu0 0.0
    %1397 = vmatprep.subr.mxu0 0.0
    %1398 = vmatpush2.msra.mxu0 0.0
    %1399 = vmatprep.subr.mxu0 0.0
    %1400 = vmatpush2.msra.mxu0 0.0
    %1401 = vmatprep.subr.mxu0 0.0
    %1402 = vmatpush2.msra.mxu0 0.0
    %1403 = vmatprep.subr.mxu0 0.0
    %1404 = vmatpush2.msra.mxu0 0.0
    %1405 = vmatprep.subr.mxu0 0.0
    %1406 = vmatpush2.msra.mxu0 0.0
    %1407 = vmatprep.subr.mxu0 0.0
    %1408 = vmatpush2.msra.mxu0 0.0
    %1409 = vmatprep.subr.mxu0 0.0
    %1410 = vmatpush2.msra.mxu0 0.0
    %1411 = vmatprep.subr.mxu0 0.0
    %1412 = vmatpush2.msra.mxu0 0.0
    %1413 = vmatprep.subr.mxu0 0.0
    %1414 = vmatpush2.msra.mxu0 0.0
    %1415 = vmatprep.subr.mxu0 0.0
    %1416 = vmatpush2.msra.mxu0 0.0
    %1417 = vmatprep.subr.mxu0 0.0
    %1418 = vmatpush2.msra.mxu0 0.0
    %1419 = vmatprep.mubr.f32.mxu0 0.0
    %v1420 = vand.u32 %v1158, 4294901760
    %1421 = vmatmul.mubr.f32.gmra.mxu0 %v1420
    %v1422 = vpop.f32.mrf.mxu0
    %v1423 = vadd.f32 %v1272, %v1422
    %v1424 = vpop.f32.mrf.mxu0
    %1425 = vdwg.mxu0
    %1426 = vmatprep.subr.mxu0 0.0
    %v1427 = vand.u32 %v1175, 4294901760
    %v1428 = vsub.f32 %v1175, %v1427
    %1429 = vmatpush1.msra.mxu0 %v1428
    %1430 = vmatprep.subr.mxu0 0.0
    %v1431 = vand.u32 %v1174, 4294901760
    %v1432 = vsub.f32 %v1174, %v1431
    %1433 = vmatpush1.msra.mxu0 %v1432
    %1434 = vmatprep.subr.mxu0 0.0
    %v1435 = vand.u32 %v1173, 4294901760
    %v1436 = vsub.f32 %v1173, %v1435
    %1437 = vmatpush1.msra.mxu0 %v1436
    %1438 = vmatprep.subr.mxu0 0.0
    %v1439 = vand.u32 %v1172, 4294901760
    %v1440 = vsub.f32 %v1172, %v1439
    %1441 = vmatpush1.msra.mxu0 %v1440
    %1442 = vmatprep.subr.mxu0 0.0
    %v1443 = vand.u32 %v1171, 4294901760
    %v1444 = vsub.f32 %v1171, %v1443
    %1445 = vmatpush1.msra.mxu0 %v1444
    %1446 = vmatprep.subr.mxu0 0.0
    %v1447 = vand.u32 %v1170, 4294901760
    %v1448 = vsub.f32 %v1170, %v1447
    %1449 = vmatpush1.msra.mxu0 %v1448
    %1450 = vmatprep.subr.mxu0 0.0
    %v1451 = vand.u32 %v1169, 4294901760
    %v1452 = vsub.f32 %v1169, %v1451
    %1453 = vmatpush1.msra.mxu0 %v1452
    %1454 = vmatprep.subr.mxu0 0.0
    %v1455 = vand.u32 %v1168, 4294901760
    %v1456 = vsub.f32 %v1168, %v1455
    %1457 = vmatpush1.msra.mxu0 %v1456
    %1458 = vmatprep.subr.mxu0 0.0
    %v1459 = vand.u32 %v1167, 4294901760
    %v1460 = vsub.f32 %v1167, %v1459
    %1461 = vmatpush1.msra.mxu0 %v1460
    %1462 = vmatprep.subr.mxu0 0.0
    %v1463 = vand.u32 %v1166, 4294901760
    %v1464 = vsub.f32 %v1166, %v1463
    %1465 = vmatpush1.msra.mxu0 %v1464
    %1466 = vmatprep.subr.mxu0 0.0
    %v1467 = vand.u32 %v1165, 4294901760
    %v1468 = vsub.f32 %v1165, %v1467
    %1469 = vmatpush1.msra.mxu0 %v1468
    %1470 = vmatprep.subr.mxu0 0.0
    %v1471 = vand.u32 %v1164, 4294901760
    %v1472 = vsub.f32 %v1164, %v1471
    %1473 = vmatpush1.msra.mxu0 %v1472
    %1474 = vmatprep.subr.mxu0 0.0
    %v1475 = vand.u32 %v1163, 4294901760
    %v1476 = vsub.f32 %v1163, %v1475
    %1477 = vmatpush1.msra.mxu0 %v1476
    %1478 = vmatprep.subr.mxu0 0.0
    %v1479 = vand.u32 %v1162, 4294901760
    %v1480 = vsub.f32 %v1162, %v1479
    %1481 = vmatpush1.msra.mxu0 %v1480
    %1482 = vmatprep.subr.mxu0 0.0
    %v1483 = vand.u32 %v1161, 4294901760
    %v1484 = vsub.f32 %v1161, %v1483
    %1485 = vmatpush1.msra.mxu0 %v1484
    %1486 = vmatprep.subr.mxu0 0.0
    %v1487 = vand.u32 %v1160, 4294901760
    %v1488 = vsub.f32 %v1160, %v1487
    %1489 = vmatpush1.msra.mxu0 %v1488
    %1490 = vmatprep.subr.mxu0 0.0
    %1491 = vmatpush2.msra.mxu0 0.0
    %1492 = vmatprep.subr.mxu0 0.0
    %1493 = vmatpush2.msra.mxu0 0.0
    %1494 = vmatprep.subr.mxu0 0.0
    %1495 = vmatpush2.msra.mxu0 0.0
    %1496 = vmatprep.subr.mxu0 0.0
    %1497 = vmatpush2.msra.mxu0 0.0
    %1498 = vmatprep.subr.mxu0 0.0
    %1499 = vmatpush2.msra.mxu0 0.0
    %1500 = vmatprep.subr.mxu0 0.0
    %1501 = vmatpush2.msra.mxu0 0.0
    %1502 = vmatprep.subr.mxu0 0.0
    %1503 = vmatpush2.msra.mxu0 0.0
    %1504 = vmatprep.subr.mxu0 0.0
    %1505 = vmatpush2.msra.mxu0 0.0
    %1506 = vmatprep.subr.mxu0 0.0
    %1507 = vmatpush2.msra.mxu0 0.0
    %1508 = vmatprep.subr.mxu0 0.0
    %1509 = vmatpush2.msra.mxu0 0.0
    %1510 = vmatprep.subr.mxu0 0.0
    %1511 = vmatpush2.msra.mxu0 0.0
    %1512 = vmatprep.subr.mxu0 0.0
    %1513 = vmatpush2.msra.mxu0 0.0
    %1514 = vmatprep.subr.mxu0 0.0
    %1515 = vmatpush2.msra.mxu0 0.0
    %1516 = vmatprep.subr.mxu0 0.0
    %1517 = vmatpush2.msra.mxu0 0.0
    %1518 = vmatprep.subr.mxu0 0.0
    %1519 = vmatpush2.msra.mxu0 0.0
    %1520 = vmatprep.subr.mxu0 0.0
    %1521 = vmatpush2.msra.mxu0 0.0
    %1522 = vmatprep.mubr.f32.mxu0 0.0
    %v1523 = vand.u32 %v1158, 4294901760
    %v1524 = vsub.f32 %v1158, %v1523
    %1525 = vmatmul.mubr.f32.gmra.mxu0 %v1524
    %v1526 = vpop.f32.mrf.mxu0
    %v1527 = vadd.f32 %v1423, %v1526
    %v1528 = vpop.f32.mrf.mxu0
    %1529 = vdwg.mxu0
    %1530 = vmatprep.subr.mxu0 0.0
    %v1531 = vand.u32 %v1175, 4294901760
    %1532 = vmatpush1.msra.mxu0 %v1531
    %1533 = vmatprep.subr.mxu0 0.0
    %v1534 = vand.u32 %v1174, 4294901760
    %1535 = vmatpush1.msra.mxu0 %v1534
    %1536 = vmatprep.subr.mxu0 0.0
    %v1537 = vand.u32 %v1173, 4294901760
    %1538 = vmatpush1.msra.mxu0 %v1537
    %1539 = vmatprep.subr.mxu0 0.0
    %v1540 = vand.u32 %v1172, 4294901760
    %1541 = vmatpush1.msra.mxu0 %v1540
    %1542 = vmatprep.subr.mxu0 0.0
    %v1543 = vand.u32 %v1171, 4294901760
    %1544 = vmatpush1.msra.mxu0 %v1543
    %1545 = vmatprep.subr.mxu0 0.0
    %v1546 = vand.u32 %v1170, 4294901760
    %1547 = vmatpush1.msra.mxu0 %v1546
    %1548 = vmatprep.subr.mxu0 0.0
    %v1549 = vand.u32 %v1169, 4294901760
    %1550 = vmatpush1.msra.mxu0 %v1549
    %1551 = vmatprep.subr.mxu0 0.0
    %v1552 = vand.u32 %v1168, 4294901760
    %1553 = vmatpush1.msra.mxu0 %v1552
    %1554 = vmatprep.subr.mxu0 0.0
    %v1555 = vand.u32 %v1167, 4294901760
    %1556 = vmatpush1.msra.mxu0 %v1555
    %1557 = vmatprep.subr.mxu0 0.0
    %v1558 = vand.u32 %v1166, 4294901760
    %1559 = vmatpush1.msra.mxu0 %v1558
    %1560 = vmatprep.subr.mxu0 0.0
    %v1561 = vand.u32 %v1165, 4294901760
    %1562 = vmatpush1.msra.mxu0 %v1561
    %1563 = vmatprep.subr.mxu0 0.0
    %v1564 = vand.u32 %v1164, 4294901760
    %1565 = vmatpush1.msra.mxu0 %v1564
    %1566 = vmatprep.subr.mxu0 0.0
    %v1567 = vand.u32 %v1163, 4294901760
    %1568 = vmatpush1.msra.mxu0 %v1567
    %1569 = vmatprep.subr.mxu0 0.0
    %v1570 = vand.u32 %v1162, 4294901760
    %1571 = vmatpush1.msra.mxu0 %v1570
    %1572 = vmatprep.subr.mxu0 0.0
    %v1573 = vand.u32 %v1161, 4294901760
    %1574 = vmatpush1.msra.mxu0 %v1573
    %1575 = vmatprep.subr.mxu0 0.0
    %v1576 = vand.u32 %v1160, 4294901760
    %1577 = vmatpush1.msra.mxu0 %v1576
    %1578 = vmatprep.subr.mxu0 0.0
    %1579 = vmatpush2.msra.mxu0 0.0
    %1580 = vmatprep.subr.mxu0 0.0
    %1581 = vmatpush2.msra.mxu0 0.0
    %1582 = vmatprep.subr.mxu0 0.0
    %1583 = vmatpush2.msra.mxu0 0.0
    %1584 = vmatprep.subr.mxu0 0.0
    %1585 = vmatpush2.msra.mxu0 0.0
    %1586 = vmatprep.subr.mxu0 0.0
    %1587 = vmatpush2.msra.mxu0 0.0
    %1588 = vmatprep.subr.mxu0 0.0
    %1589 = vmatpush2.msra.mxu0 0.0
    %1590 = vmatprep.subr.mxu0 0.0
    %1591 = vmatpush2.msra.mxu0 0.0
    %1592 = vmatprep.subr.mxu0 0.0
    %1593 = vmatpush2.msra.mxu0 0.0
    %1594 = vmatprep.subr.mxu0 0.0
    %1595 = vmatpush2.msra.mxu0 0.0
    %1596 = vmatprep.subr.mxu0 0.0
    %1597 = vmatpush2.msra.mxu0 0.0
    %1598 = vmatprep.subr.mxu0 0.0
    %1599 = vmatpush2.msra.mxu0 0.0
    %1600 = vmatprep.subr.mxu0 0.0
    %1601 = vmatpush2.msra.mxu0 0.0
    %1602 = vmatprep.subr.mxu0 0.0
    %1603 = vmatpush2.msra.mxu0 0.0
    %1604 = vmatprep.subr.mxu0 0.0
    %1605 = vmatpush2.msra.mxu0 0.0
    %1606 = vmatprep.subr.mxu0 0.0
    %1607 = vmatpush2.msra.mxu0 0.0
    %1608 = vmatprep.subr.mxu0 0.0
    %1609 = vmatpush2.msra.mxu0 0.0
    %1610 = vmatprep.mubr.f32.mxu0 0.0
    %v1611 = vand.u32 %v1158, 4294901760
    %v1612 = vsub.f32 %v1158, %v1611
    %v1613 = vand.u32 %v1612, 4294901760
    %1614 = vmatmul.mubr.f32.gmra.mxu0 %v1613
    %v1615 = vpop.f32.mrf.mxu0
    %v1616 = vadd.f32 %v1527, %v1615
    %v1617 = vpop.f32.mrf.mxu0
    %1618 = vdwg.mxu0
    %1619 = vmatprep.subr.mxu0 0.0
    %v1620 = vand.u32 %v1175, 4294901760
    %v1621 = vsub.f32 %v1175, %v1620
    %v1622 = vand.u32 %v1621, 4294901760
    %1623 = vmatpush1.msra.mxu0 %v1622
    %1624 = vmatprep.subr.mxu0 0.0
    %v1625 = vand.u32 %v1174, 4294901760
    %v1626 = vsub.f32 %v1174, %v1625
    %v1627 = vand.u32 %v1626, 4294901760
    %1628 = vmatpush1.msra.mxu0 %v1627
    %1629 = vmatprep.subr.mxu0 0.0
    %v1630 = vand.u32 %v1173, 4294901760
    %v1631 = vsub.f32 %v1173, %v1630
    %v1632 = vand.u32 %v1631, 4294901760
    %1633 = vmatpush1.msra.mxu0 %v1632
    %1634 = vmatprep.subr.mxu0 0.0
    %v1635 = vand.u32 %v1172, 4294901760
    %v1636 = vsub.f32 %v1172, %v1635
    %v1637 = vand.u32 %v1636, 4294901760
    %1638 = vmatpush1.msra.mxu0 %v1637
    %1639 = vmatprep.subr.mxu0 0.0
    %v1640 = vand.u32 %v1171, 4294901760
    %v1641 = vsub.f32 %v1171, %v1640
    %v1642 = vand.u32 %v1641, 4294901760
    %1643 = vmatpush1.msra.mxu0 %v1642
    %1644 = vmatprep.subr.mxu0 0.0
    %v1645 = vand.u32 %v1170, 4294901760
    %v1646 = vsub.f32 %v1170, %v1645
    %v1647 = vand.u32 %v1646, 4294901760
    %1648 = vmatpush1.msra.mxu0 %v1647
    %1649 = vmatprep.subr.mxu0 0.0
    %v1650 = vand.u32 %v1169, 4294901760
    %v1651 = vsub.f32 %v1169, %v1650
    %v1652 = vand.u32 %v1651, 4294901760
    %1653 = vmatpush1.msra.mxu0 %v1652
    %1654 = vmatprep.subr.mxu0 0.0
    %v1655 = vand.u32 %v1168, 4294901760
    %v1656 = vsub.f32 %v1168, %v1655
    %v1657 = vand.u32 %v1656, 4294901760
    %1658 = vmatpush1.msra.mxu0 %v1657
    %1659 = vmatprep.subr.mxu0 0.0
    %v1660 = vand.u32 %v1167, 4294901760
    %v1661 = vsub.f32 %v1167, %v1660
    %v1662 = vand.u32 %v1661, 4294901760
    %1663 = vmatpush1.msra.mxu0 %v1662
    %1664 = vmatprep.subr.mxu0 0.0
    %v1665 = vand.u32 %v1166, 4294901760
    %v1666 = vsub.f32 %v1166, %v1665
    %v1667 = vand.u32 %v1666, 4294901760
    %1668 = vmatpush1.msra.mxu0 %v1667
    %1669 = vmatprep.subr.mxu0 0.0
    %v1670 = vand.u32 %v1165, 4294901760
    %v1671 = vsub.f32 %v1165, %v1670
    %v1672 = vand.u32 %v1671, 4294901760
    %1673 = vmatpush1.msra.mxu0 %v1672
    %1674 = vmatprep.subr.mxu0 0.0
    %v1675 = vand.u32 %v1164, 4294901760
    %v1676 = vsub.f32 %v1164, %v1675
    %v1677 = vand.u32 %v1676, 4294901760
    %1678 = vmatpush1.msra.mxu0 %v1677
    %1679 = vmatprep.subr.mxu0 0.0
    %v1680 = vand.u32 %v1163, 4294901760
    %v1681 = vsub.f32 %v1163, %v1680
    %v1682 = vand.u32 %v1681, 4294901760
    %1683 = vmatpush1.msra.mxu0 %v1682
    %1684 = vmatprep.subr.mxu0 0.0
    %v1685 = vand.u32 %v1162, 4294901760
    %v1686 = vsub.f32 %v1162, %v1685
    %v1687 = vand.u32 %v1686, 4294901760
    %1688 = vmatpush1.msra.mxu0 %v1687
    %1689 = vmatprep.subr.mxu0 0.0
    %v1690 = vand.u32 %v1161, 4294901760
    %v1691 = vsub.f32 %v1161, %v1690
    %v1692 = vand.u32 %v1691, 4294901760
    %1693 = vmatpush1.msra.mxu0 %v1692
    %1694 = vmatprep.subr.mxu0 0.0
    %v1695 = vand.u32 %v1160, 4294901760
    %v1696 = vsub.f32 %v1160, %v1695
    %v1697 = vand.u32 %v1696, 4294901760
    %1698 = vmatpush1.msra.mxu0 %v1697
    %1699 = vmatprep.subr.mxu0 0.0
    %1700 = vmatpush2.msra.mxu0 0.0
    %1701 = vmatprep.subr.mxu0 0.0
    %1702 = vmatpush2.msra.mxu0 0.0
    %1703 = vmatprep.subr.mxu0 0.0
    %1704 = vmatpush2.msra.mxu0 0.0
    %1705 = vmatprep.subr.mxu0 0.0
    %1706 = vmatpush2.msra.mxu0 0.0
    %1707 = vmatprep.subr.mxu0 0.0
    %1708 = vmatpush2.msra.mxu0 0.0
    %1709 = vmatprep.subr.mxu0 0.0
    %1710 = vmatpush2.msra.mxu0 0.0
    %1711 = vmatprep.subr.mxu0 0.0
    %1712 = vmatpush2.msra.mxu0 0.0
    %1713 = vmatprep.subr.mxu0 0.0
    %1714 = vmatpush2.msra.mxu0 0.0
    %1715 = vmatprep.subr.mxu0 0.0
    %1716 = vmatpush2.msra.mxu0 0.0
    %1717 = vmatprep.subr.mxu0 0.0
    %1718 = vmatpush2.msra.mxu0 0.0
    %1719 = vmatprep.subr.mxu0 0.0
    %1720 = vmatpush2.msra.mxu0 0.0
    %1721 = vmatprep.subr.mxu0 0.0
    %1722 = vmatpush2.msra.mxu0 0.0
    %1723 = vmatprep.subr.mxu0 0.0
    %1724 = vmatpush2.msra.mxu0 0.0
    %1725 = vmatprep.subr.mxu0 0.0
    %1726 = vmatpush2.msra.mxu0 0.0
    %1727 = vmatprep.subr.mxu0 0.0
    %1728 = vmatpush2.msra.mxu0 0.0
    %1729 = vmatprep.subr.mxu0 0.0
    %1730 = vmatpush2.msra.mxu0 0.0
    %1731 = vmatprep.mubr.f32.mxu0 0.0
    %v1732 = vand.u32 %v1158, 4294901760
    %1733 = vmatmul.mubr.f32.gmra.mxu0 %v1732
    %v1734 = vpop.f32.mrf.mxu0
    %v1735 = vadd.f32 %v1616, %v1734
    %v1736 = vpop.f32.mrf.mxu0
    %1737 = vdwg.mxu0
    %1738 = vmatprep.subr.mxu0 0.0
    %v1739 = vand.u32 %v1175, 4294901760
    %1740 = vmatpush1.msra.mxu0 %v1739
    %1741 = vmatprep.subr.mxu0 0.0
    %v1742 = vand.u32 %v1174, 4294901760
    %1743 = vmatpush1.msra.mxu0 %v1742
    %1744 = vmatprep.subr.mxu0 0.0
    %v1745 = vand.u32 %v1173, 4294901760
    %1746 = vmatpush1.msra.mxu0 %v1745
    %1747 = vmatprep.subr.mxu0 0.0
    %v1748 = vand.u32 %v1172, 4294901760
    %1749 = vmatpush1.msra.mxu0 %v1748
    %1750 = vmatprep.subr.mxu0 0.0
    %v1751 = vand.u32 %v1171, 4294901760
    %1752 = vmatpush1.msra.mxu0 %v1751
    %1753 = vmatprep.subr.mxu0 0.0
    %v1754 = vand.u32 %v1170, 4294901760
    %1755 = vmatpush1.msra.mxu0 %v1754
    %1756 = vmatprep.subr.mxu0 0.0
    %v1757 = vand.u32 %v1169, 4294901760
    %1758 = vmatpush1.msra.mxu0 %v1757
    %1759 = vmatprep.subr.mxu0 0.0
    %v1760 = vand.u32 %v1168, 4294901760
    %1761 = vmatpush1.msra.mxu0 %v1760
    %1762 = vmatprep.subr.mxu0 0.0
    %v1763 = vand.u32 %v1167, 4294901760
    %1764 = vmatpush1.msra.mxu0 %v1763
    %1765 = vmatprep.subr.mxu0 0.0
    %v1766 = vand.u32 %v1166, 4294901760
    %1767 = vmatpush1.msra.mxu0 %v1766
    %1768 = vmatprep.subr.mxu0 0.0
    %v1769 = vand.u32 %v1165, 4294901760
    %1770 = vmatpush1.msra.mxu0 %v1769
    %1771 = vmatprep.subr.mxu0 0.0
    %v1772 = vand.u32 %v1164, 4294901760
    %1773 = vmatpush1.msra.mxu0 %v1772
    %1774 = vmatprep.subr.mxu0 0.0
    %v1775 = vand.u32 %v1163, 4294901760
    %1776 = vmatpush1.msra.mxu0 %v1775
    %1777 = vmatprep.subr.mxu0 0.0
    %v1778 = vand.u32 %v1162, 4294901760
    %1779 = vmatpush1.msra.mxu0 %v1778
    %1780 = vmatprep.subr.mxu0 0.0
    %v1781 = vand.u32 %v1161, 4294901760
    %1782 = vmatpush1.msra.mxu0 %v1781
    %1783 = vmatprep.subr.mxu0 0.0
    %v1784 = vand.u32 %v1160, 4294901760
    %1785 = vmatpush1.msra.mxu0 %v1784
    %1786 = vmatprep.subr.mxu0 0.0
    %1787 = vmatpush2.msra.mxu0 0.0
    %1788 = vmatprep.subr.mxu0 0.0
    %1789 = vmatpush2.msra.mxu0 0.0
    %1790 = vmatprep.subr.mxu0 0.0
    %1791 = vmatpush2.msra.mxu0 0.0
    %1792 = vmatprep.subr.mxu0 0.0
    %1793 = vmatpush2.msra.mxu0 0.0
    %1794 = vmatprep.subr.mxu0 0.0
    %1795 = vmatpush2.msra.mxu0 0.0
    %1796 = vmatprep.subr.mxu0 0.0
    %1797 = vmatpush2.msra.mxu0 0.0
    %1798 = vmatprep.subr.mxu0 0.0
    %1799 = vmatpush2.msra.mxu0 0.0
    %1800 = vmatprep.subr.mxu0 0.0
    %1801 = vmatpush2.msra.mxu0 0.0
    %1802 = vmatprep.subr.mxu0 0.0
    %1803 = vmatpush2.msra.mxu0 0.0
    %1804 = vmatprep.subr.mxu0 0.0
    %1805 = vmatpush2.msra.mxu0 0.0
    %1806 = vmatprep.subr.mxu0 0.0
    %1807 = vmatpush2.msra.mxu0 0.0
    %1808 = vmatprep.subr.mxu0 0.0
    %1809 = vmatpush2.msra.mxu0 0.0
    %1810 = vmatprep.subr.mxu0 0.0
    %1811 = vmatpush2.msra.mxu0 0.0
    %1812 = vmatprep.subr.mxu0 0.0
    %1813 = vmatpush2.msra.mxu0 0.0
    %1814 = vmatprep.subr.mxu0 0.0
    %1815 = vmatpush2.msra.mxu0 0.0
    %1816 = vmatprep.subr.mxu0 0.0
    %1817 = vmatpush2.msra.mxu0 0.0
    %1818 = vmatprep.mubr.f32.mxu0 0.0
    %v1819 = vand.u32 %v1158, 4294901760
    %1820 = vmatmul.mubr.f32.gmra.mxu0 %v1819
    %v1821 = vpop.f32.mrf.mxu0
    %v1822 = vadd.f32 %v1735, %v1821
    %v1823 = vpop.f32.mrf.mxu0
    %1824 = vdwg.mxu0
    %vm1825 = vcmask 15360
    %1826 = vst.msk [vmem:[%s3] sm:$0xff] %vm1825, %v1822
    // Predicated region
    $region18: #{dqn_forward_packed.1} parent=1 // pred_check
      _
    $region19: #{dqn_forward_packed.1} parent=1 // pred_check_branch
      %1828 = sbr.rel (0) target = $region21
    $region20: #{dqn_forward_packed.1} parent=1 // pred_region
      _
    $region21: #{dqn_forward_packed.1} parent=1 // pred_fallthru
      _
    // Predicated region
    $region22: #{dqn_forward_packed.1} parent=1 // pred_check
      _
    $region23: #{dqn_forward_packed.1} parent=1 // pred_check_branch
      %1830 = sbr.rel (0) target = $region25
    $region24: #{dqn_forward_packed.1} parent=1 // pred_region
      _
    $region25: #{dqn_forward_packed.1} parent=1 // pred_fallthru
      _
    %1831 = vsyncpa [#allocation3], 1

</llo_original>
